<compile_context>
chip_gen: v6e
topology: v6e:2x2x1
jax: 0.10.0
libtpu: 0.0.40
codegen_flags: <defaults>
</compile_context>

<pallas_src>
import functools
import math

import jax
import jax.numpy as jnp
from jax.experimental import pallas as pl
from jax.experimental.pallas import tpu as pltpu


# ----------------------------------------------------------------------------
# helpers
# ----------------------------------------------------------------------------
def _round_up(x, m):
    return (x + m - 1) // m * m


def _pad_axis(a, axis, target):
    if a.shape[axis] >= target:
        return a
    pad = [(0, 0)] * a.ndim
    pad[axis] = (0, target - a.shape[axis])
    return jnp.pad(a, pad)


def _choose_tile(m, tile_m):
    tile = max(16, min(int(tile_m), _round_up(m, 16)))
    tile = _round_up(tile, 16)
    mp = _round_up(m, tile)
    return tile, mp


def _im2col(x_nhwc_padded, kh, kw, stride):
    """(N, Hp, Wp, Cin) -> (N*Hout*Wout, kh*kw*Cin) patches (plain-JAX glue)."""
    N, Hp, Wp, Cin = x_nhwc_padded.shape
    Hout = (Hp - kh) // stride + 1
    Wout = (Wp - kw) // stride + 1
    cols = []
    for dy in range(kh):
        for dx in range(kw):
            patch = jax.lax.slice(
                x_nhwc_padded,
                (0, dy, dx, 0),
                (N, dy + (Hout - 1) * stride + 1, dx + (Wout - 1) * stride + 1, Cin),
                (1, stride, stride, 1))
            cols.append(patch.reshape(N * Hout * Wout, Cin))
    return jnp.concatenate(cols, axis=1)


def _w_oihw_to_2d(w):
    """(Cout, Cin, kh, kw) -> (kh*kw*Cin, Cout), matching im2col column order."""
    Cout = w.shape[0]
    return jnp.transpose(w, (2, 3, 1, 0)).reshape(-1, Cout)


# ----------------------------------------------------------------------------
# Pallas kernels
# ----------------------------------------------------------------------------
def _conv_stats_kernel(p_ref, w_ref, y_ref, sum_ref, sq_ref):
    """Pass 1: (TILE_M, K)@(K, Cp) matmul (bf16 in, f32 acc) + BN stat accum."""
    y = jnp.dot(p_ref[...], w_ref[...], preferred_element_type=jnp.float32)
    y_ref[...] = y

    @pl.when(pl.program_id(0) == 0)
    def _init():
        sum_ref[...] = jnp.zeros_like(sum_ref)
        sq_ref[...] = jnp.zeros_like(sq_ref)

    sum_ref[...] += jnp.sum(y, axis=0, keepdims=True)
    sq_ref[...] += jnp.sum(y * y, axis=0, keepdims=True)


def _bn_apply_kernel(*refs, apply_relu, has_residual):
    """Pass 2: y*scale+shift (+ normalized residual) (+ ReLU), all f32 VPU."""
    if has_residual:
        y_ref, sc_ref, sh_ref, r_ref, rs_ref, rh_ref, o_ref = refs
    else:
        y_ref, sc_ref, sh_ref, o_ref = refs
    y = y_ref[...] * sc_ref[...] + sh_ref[...]
    if has_residual:
        y = y + (r_ref[...] * rs_ref[...] + rh_ref[...])
    if apply_relu:
        y = jnp.maximum(y, 0.0)
    o_ref[...] = y.astype(o_ref.dtype)


# ----------------------------------------------------------------------------
# Pallas wrappers
# ----------------------------------------------------------------------------
def masked_conv_stats(patches, w2d, *, tile_m):
    """Tiled conv-as-matmul; returns raw output + per-channel (sum, sumsq)."""
    Mp, K = patches.shape
    Cp = w2d.shape[1]
    grid_m = Mp // tile_m
    ip, iw = patches.dtype.itemsize, w2d.dtype.itemsize

    vmem = (2 * tile_m * K * ip + 2 * K * Cp * iw
            + 2 * tile_m * Cp * 4 + 4 * Cp * 4 + (4 << 20))
    vmem = int(min(max(vmem, 32 << 20), 64 << 20))
    cost = pl.CostEstimate(
        flops=2 * Mp * K * Cp, transcendentals=0,
        bytes_accessed=Mp * K * ip + K * Cp * iw + Mp * Cp * 4 + 2 * Cp * 4)

    return pl.pallas_call(
        _conv_stats_kernel,
        out_shape=(jax.ShapeDtypeStruct((Mp, Cp), jnp.float32),
                   jax.ShapeDtypeStruct((1, Cp), jnp.float32),
                   jax.ShapeDtypeStruct((1, Cp), jnp.float32)),
        grid=(grid_m,),
        in_specs=[pl.BlockSpec((tile_m, K), lambda m: (m, 0)),
                  pl.BlockSpec((K, Cp), lambda m: (0, 0))],
        out_specs=(pl.BlockSpec((tile_m, Cp), lambda m: (m, 0)),
                   pl.BlockSpec((1, Cp), lambda m: (0, 0)),
                   pl.BlockSpec((1, Cp), lambda m: (0, 0))),
        compiler_params=pltpu.CompilerParams(
            dimension_semantics=("arbitrary",), vmem_limit_bytes=vmem),
        cost_estimate=cost,
    )(patches, w2d)


def bn_apply(y_raw, scale, shift, residual=None, res_scale=None, res_shift=None,
             *, apply_relu, out_dtype, tile_m):
    """Tiled BN-apply (+ fused normalized residual, ReLU)."""
    Mp, Cp = y_raw.shape
    grid_m = Mp // tile_m
    has_res = residual is not None

    kern = functools.partial(_bn_apply_kernel,
                             apply_relu=apply_relu, has_residual=has_res)
    in_specs = [pl.BlockSpec((tile_m, Cp), lambda m: (m, 0)),
                pl.BlockSpec((1, Cp), lambda m: (0, 0)),
                pl.BlockSpec((1, Cp), lambda m: (0, 0))]
    args = [y_raw, scale, shift]
    if has_res:
        in_specs += [pl.BlockSpec((tile_m, Cp), lambda m: (m, 0)),
                     pl.BlockSpec((1, Cp), lambda m: (0, 0)),
                     pl.BlockSpec((1, Cp), lambda m: (0, 0))]
        args += [residual, res_scale, res_shift]

    out_isize = jnp.dtype(out_dtype).itemsize
    res_bytes = Mp * Cp * 4 if has_res else 0
    vmem = (2 * tile_m * Cp * (4 + 4 + out_isize) + 6 * Cp * 4 + (4 << 20))
    vmem = int(min(max(vmem, 32 << 20), 64 << 20))
    cost = pl.CostEstimate(
        flops=Mp * Cp * (5 if has_res else 3), transcendentals=0,
        bytes_accessed=Mp * Cp * 4 + res_bytes + Mp * Cp * out_isize + 4 * Cp * 4)

    return pl.pallas_call(
        kern,
        out_shape=jax.ShapeDtypeStruct((Mp, Cp), out_dtype),
        grid=(grid_m,),
        in_specs=in_specs,
        out_specs=pl.BlockSpec((tile_m, Cp), lambda m: (m, 0)),
        compiler_params=pltpu.CompilerParams(
            dimension_semantics=("parallel",), vmem_limit_bytes=vmem),
        cost_estimate=cost,
    )(*args)


def _bn_scale_shift(s, q, count, gamma_p, beta_p, eps):
    """Fold per-channel sum / sumsq into scale/shift (all f32, tiny op)."""
    mean = s / count
    var = jnp.maximum(q / count - mean * mean, 0.0)
    inv = jax.lax.rsqrt(var + eps)
    scale = gamma_p * inv
    shift = beta_p - mean * scale
    return scale, shift


# ----------------------------------------------------------------------------
# MaskedBasicBlock forward
# ----------------------------------------------------------------------------
def masked_basic_block(x_nchw, params, stride, *, tile_m=512,
                       threshold=0.0, eps=1e-5):
    """Forward pass of MaskedBasicBlock. Input/output are NCHW float32."""
    N, Cin, H, W = x_nchw.shape
    planes = params["w1"].shape[0]
    Cp = _round_up(planes, 128)                      # lane-dense output channels

    x = jnp.transpose(x_nchw, (0, 2, 3, 1)).astype(jnp.float32)   # NHWC f32
    x_bf = x.astype(jnp.bfloat16)                                  # MXU operand

    Ho = (H - 1) // stride + 1
    Wo = (W - 1) // stride + 1
    M = N * Ho * Wo
    tm, Mp = _choose_tile(M, tile_m)

    def prep_w(w):
        w2d = _w_oihw_to_2d(w)
        if threshold != 0.0:
            # BinaryStep mask on full-precision weights (matches the PyTorch
            # forward). Skipped entirely when threshold == 0 (no-op there).
            w2d = w2d * ((jnp.abs(w2d) - threshold) > 0.0).astype(w2d.dtype)
        return _pad_axis(w2d, 1, Cp).astype(jnp.bfloat16)

    def prep_vec(v):
        return _pad_axis(v.reshape(1, -1).astype(jnp.float32), 1, Cp)

    # ---- conv1 (3x3, pad 1, stride) + bn1 + relu ---------------------------
    xp = jnp.pad(x_bf, ((0, 0), (1, 1), (1, 1), (0, 0)))
    p1 = _pad_axis(_im2col(xp, 3, 3, stride), 0, Mp)
    y1, s1, q1 = masked_conv_stats(p1, prep_w(params["w1"]), tile_m=tm)
    sc1, sh1 = _bn_scale_shift(s1, q1, M, prep_vec(params["bn1_g"]),
                               prep_vec(params["bn1_b"]), eps)
    out1 = bn_apply(y1, sc1, sh1, apply_relu=True,
                    out_dtype=jnp.bfloat16, tile_m=tm)
    out1 = out1[:M, :planes].reshape(N, Ho, Wo, planes)

    # ---- shortcut ----------------------------------------------------------
    if stride != 1 or Cin != planes:
        xs = _pad_axis(x_bf[:, ::stride, ::stride, :].reshape(M, Cin), 0, Mp)
        ysc, ss, qs = masked_conv_stats(xs, prep_w(params["ws"]), tile_m=tm)
        rscale, rshift = _bn_scale_shift(ss, qs, M, prep_vec(params["bns_g"]),
                                         prep_vec(params["bns_b"]), eps)
        residual = ysc                              # raw; BN fused into pass 2
    else:
        residual = _pad_axis(_pad_axis(x.reshape(M, Cin), 1, Cp), 0, Mp)
        rscale = jnp.ones((1, Cp), jnp.float32)
        rshift = jnp.zeros((1, Cp), jnp.float32)

    # ---- conv2 (3x3, pad 1, stride 1) + bn2 + shortcut + relu (fused) ------
    out1p = jnp.pad(out1, ((0, 0), (1, 1), (1, 1), (0, 0)))
    p2 = _pad_axis(_im2col(out1p, 3, 3, 1), 0, Mp)
    y2, s2, q2 = masked_conv_stats(p2, prep_w(params["w2"]), tile_m=tm)
    sc2, sh2 = _bn_scale_shift(s2, q2, M, prep_vec(params["bn2_g"]),
                               prep_vec(params["bn2_b"]), eps)
    out2 = bn_apply(y2, sc2, sh2, residual, rscale, rshift,
                    apply_relu=True, out_dtype=jnp.float32, tile_m=tm)
    out2 = out2[:M, :planes].reshape(N, Ho, Wo, planes)
    return jnp.transpose(out2, (0, 3, 1, 2))        # back to NCHW


# ----------------------------------------------------------------------------
# init + pure-JAX reference
# ----------------------------------------------------------------------------
def init_params(key, in_planes, planes, stride):
    """Deterministic init matching the module (kaiming_uniform a=sqrt(5) ->
    bound = 1/sqrt(fan_in); BN gamma=1, beta=0; threshold=0)."""
    ks = jax.random.split(key, 3)

    def kaiming_uniform(k, shape):
        fan_in = shape[1] * shape[2] * shape[3]
        bound = 1.0 / math.sqrt(fan_in)
        return jax.random.uniform(k, shape, jnp.float32, -bound, bound)

    params = {
        "w1": kaiming_uniform(ks[0], (planes, in_planes, 3, 3)),
        "w2": kaiming_uniform(ks[1], (planes, planes, 3, 3)),
        "bn1_g": jnp.ones((planes,), jnp.float32),
        "bn1_b": jnp.zeros((planes,), jnp.float32),
        "bn2_g": jnp.ones((planes,), jnp.float32),
        "bn2_b": jnp.zeros((planes,), jnp.float32),
    }
    if stride != 1 or in_planes != planes:
        params["ws"] = kaiming_uniform(ks[2], (planes, in_planes, 1, 1))
        params["bns_g"] = jnp.ones((planes,), jnp.float32)
        params["bns_b"] = jnp.zeros((planes,), jnp.float32)
    return params


def reference_forward(x, params, stride, eps=1e-5, compute_dtype=jnp.float32):
    """Pure-JAX reference (same math via lax.conv). compute_dtype controls the
    conv operand precision so a bf16-matched check stays tight."""
    def mask_w(w, thr=0.0):
        return w * ((jnp.abs(w) - thr) > 0.0).astype(w.dtype)

    def conv(x, w, s, p):
        return jax.lax.conv_general_dilated(
            x.astype(compute_dtype), mask_w(w).astype(compute_dtype),
            (s, s), [(p, p), (p, p)],
            dimension_numbers=("NCHW", "OIHW", "NCHW"),
            preferred_element_type=jnp.float32)

    def bn(y, g, b):
        mean = y.mean(axis=(0, 2, 3), keepdims=True)
        var = jnp.square(y - mean).mean(axis=(0, 2, 3), keepdims=True)
        yn = (y - mean) / jnp.sqrt(var + eps)
        return yn * g.reshape(1, -1, 1, 1) + b.reshape(1, -1, 1, 1)

    out = jax.nn.relu(bn(conv(x, params["w1"], stride, 1),
                         params["bn1_g"], params["bn1_b"]))
    out2 = bn(conv(out, params["w2"], 1, 1), params["bn2_g"], params["bn2_b"])
    if "ws" in params:
        sc = bn(conv(x, params["ws"], stride, 0),
                params["bns_g"], params["bns_b"])
    else:
        sc = x
    return jax.nn.relu(out2 + sc)


if __name__ == "__main__":
    key = jax.random.PRNGKey(0)
    kx, kp = jax.random.split(key)

    in_planes, planes, stride = 4, 8, 1   # in_planes != planes -> shortcut conv
    x = jax.random.normal(kx, (2, in_planes, 16, 16), jnp.float32)
    params = init_params(kp, in_planes, planes, stride)

    # tile_m=128 so the demo exercises a multi-tile grid (M = 2*16*16 = 512).
    fwd = jax.jit(functools.partial(masked_basic_block, stride=stride, tile_m=128))
    out = jax.block_until_ready(fwd(x, params))
    assert out.shape == (2, planes, 16, 16), out.shape

    # Compare against a precision-matched (bf16 conv operands, f32 accum)
    # reference; the full-f32 reference differs only at bf16 rounding level.
    ref = reference_forward(x, params, stride, compute_dtype=jnp.bfloat16)
    if not jnp.allclose(out, ref, atol=2e-2, rtol=2e-2):
        raise AssertionError(
            "Pallas output mismatch vs JAX reference; max abs diff = %f"
            % float(jnp.max(jnp.abs(out - ref))))

    # TODO(synk): stateful side effects of the PyTorch module (self.weight.data
    # overwrite, self.mask bookkeeping, data-dependent "ratio <= 0.01 ->
    # reset threshold" branch) have no stateless JAX equivalent; the forward
    # math itself is fully reproduced (the reset branch is a no-op at the
    # module's threshold=0 init value).
    print("KERNEL_OK")
</pallas_src>

<mosaic_0001>
module attributes {stable_mosaic.version = 11 : i64} {
  func.func @_conv_stats_kernel(%arg0: i32, %arg1: memref<128x36xbf16, #tpu.memory_space<vmem>>, %arg2: memref<36x128xbf16, #tpu.memory_space<vmem>>, %arg3: memref<128x128xf32, #tpu.memory_space<vmem>>, %arg4: memref<1x128xf32, #tpu.memory_space<vmem>>, %arg5: memref<1x128xf32, #tpu.memory_space<vmem>>) attributes {dimension_semantics = [#tpu.dimension_semantics<arbitrary>], iteration_bounds = array<i64: 4>, scalar_prefetch = 0 : i64, scratch_operands = 0 : i64, tpu.core_type = #tpu.core_type<tc>, window_params = [{transform_indices = @transform_0, window_bounds = array<i64: 128, 36>}, {pipeline_mode = #tpu.pipeline_mode<synchronous>, transform_indices = @transform_1, window_bounds = array<i64: 36, 128>}, {transform_indices = @transform_2, window_bounds = array<i64: 128, 128>}, {pipeline_mode = #tpu.pipeline_mode<synchronous>, transform_indices = @transform_3, window_bounds = array<i64: 1, 128>}, {pipeline_mode = #tpu.pipeline_mode<synchronous>, transform_indices = @transform_4, window_bounds = array<i64: 1, 128>}]} {
    %c0 = arith.constant 0 : index
    %c0_0 = arith.constant 0 : index
    %0 = vector.load %arg1[%c0, %c0_0] : memref<128x36xbf16, #tpu.memory_space<vmem>>, vector<128x36xbf16>
    %c0_1 = arith.constant 0 : index
    %c0_2 = arith.constant 0 : index
    %1 = vector.load %arg2[%c0_1, %c0_2] : memref<36x128xbf16, #tpu.memory_space<vmem>>, vector<36x128xbf16>
    %cst = arith.constant dense<0.000000e+00> : vector<128x128xf32>
    %2 = tpu.matmul %0, %1, %cst {dimension_numbers = #tpu.dot_dimension_numbers<[1], [0], [0], [1], [0, 0, 1, 1], [], []>} : vector<128x36xbf16>, vector<36x128xbf16>, vector<128x128xf32> -> vector<128x128xf32>
    %c0_3 = arith.constant 0 : index
    %c0_4 = arith.constant 0 : index
    %3 = vector.load %arg3[%c0_3, %c0_4] : memref<128x128xf32, #tpu.memory_space<vmem>>, vector<128x128xf32>
    tpu.vector_store %arg3[%c0_3, %c0_4], %2 {strides = array<i32>} : memref<128x128xf32, #tpu.memory_space<vmem>>, vector<128x128xf32>,
    %c0_i32 = arith.constant 0 : i32
    %4 = arith.cmpi eq, %arg0, %c0_i32 : i32
    %5 = arith.extui %4 : i1 to i32
    %c0_i32_5 = arith.constant 0 : i32
    %6 = arith.cmpi ne, %5, %c0_i32_5 : i32
    scf.if %6 {
      %cst_16 = arith.constant 0.000000e+00 : f32
      %18 = vector.broadcast %cst_16 : f32 to vector<1x128xf32>
      %c0_17 = arith.constant 0 : index
      %c0_18 = arith.constant 0 : index
      %19 = vector.load %arg4[%c0_17, %c0_18] : memref<1x128xf32, #tpu.memory_space<vmem>>, vector<1x128xf32>
      tpu.vector_store %arg4[%c0_17, %c0_18], %18 {strides = array<i32>} : memref<1x128xf32, #tpu.memory_space<vmem>>, vector<1x128xf32>,
      %cst_19 = arith.constant 0.000000e+00 : f32
      %20 = vector.broadcast %cst_19 : f32 to vector<1x128xf32>
      %c0_20 = arith.constant 0 : index
      %c0_21 = arith.constant 0 : index
      %21 = vector.load %arg5[%c0_20, %c0_21] : memref<1x128xf32, #tpu.memory_space<vmem>>, vector<1x128xf32>
      tpu.vector_store %arg5[%c0_20, %c0_21], %20 {strides = array<i32>} : memref<1x128xf32, #tpu.memory_space<vmem>>, vector<1x128xf32>,
    } else {
    }
    %c0_6 = arith.constant 0 : index
    %c0_7 = arith.constant 0 : index
    %7 = vector.load %arg4[%c0_6, %c0_7] : memref<1x128xf32, #tpu.memory_space<vmem>>, vector<1x128xf32>
    %cst_8 = arith.constant dense<0.000000e+00> : vector<128xf32>
    %8 = vector.multi_reduction <add>, %2, %cst_8 [0] : vector<128x128xf32> to vector<128xf32>
    %9 = vector.shape_cast %8 : vector<128xf32> to vector<1x128xf32>
    %10 = arith.addf %7, %9 : vector<1x128xf32>
    %c0_9 = arith.constant 0 : index
    %c0_10 = arith.constant 0 : index
    %11 = vector.load %arg4[%c0_9, %c0_10] : memref<1x128xf32, #tpu.memory_space<vmem>>, vector<1x128xf32>
    tpu.vector_store %arg4[%c0_9, %c0_10], %10 {strides = array<i32>} : memref<1x128xf32, #tpu.memory_space<vmem>>, vector<1x128xf32>,
    %c0_11 = arith.constant 0 : index
    %c0_12 = arith.constant 0 : index
    %12 = vector.load %arg5[%c0_11, %c0_12] : memref<1x128xf32, #tpu.memory_space<vmem>>, vector<1x128xf32>
    %13 = arith.mulf %2, %2 : vector<128x128xf32>
    %cst_13 = arith.constant dense<0.000000e+00> : vector<128xf32>
    %14 = vector.multi_reduction <add>, %13, %cst_13 [0] : vector<128x128xf32> to vector<128xf32>
    %15 = vector.shape_cast %14 : vector<128xf32> to vector<1x128xf32>
    %16 = arith.addf %12, %15 : vector<1x128xf32>
    %c0_14 = arith.constant 0 : index
    %c0_15 = arith.constant 0 : index
    %17 = vector.load %arg5[%c0_14, %c0_15] : memref<1x128xf32, #tpu.memory_space<vmem>>, vector<1x128xf32>
    tpu.vector_store %arg5[%c0_14, %c0_15], %16 {strides = array<i32>} : memref<1x128xf32, #tpu.memory_space<vmem>>, vector<1x128xf32>,
    return
  }
  func.func @transform_0(%arg0: i32) -> (i32, i32) {
    %c0_i32 = arith.constant 0 : i32
    %c0_i32_0 = arith.constant 0 : i32
    return %arg0, %c0_i32 : i32, i32
  }
  func.func @transform_1(%arg0: i32) -> (i32, i32) {
    %c0_i32 = arith.constant 0 : i32
    %c0_i32_0 = arith.constant 0 : i32
    %c0_i32_1 = arith.constant 0 : i32
    return %c0_i32, %c0_i32_0 : i32, i32
  }
  func.func @transform_2(%arg0: i32) -> (i32, i32) {
    %c0_i32 = arith.constant 0 : i32
    %c0_i32_0 = arith.constant 0 : i32
    return %arg0, %c0_i32 : i32, i32
  }
  func.func @transform_3(%arg0: i32) -> (i32, i32) {
    %c0_i32 = arith.constant 0 : i32
    %c0_i32_0 = arith.constant 0 : i32
    %c0_i32_1 = arith.constant 0 : i32
    return %c0_i32, %c0_i32_0 : i32, i32
  }
  func.func @transform_4(%arg0: i32) -> (i32, i32) {
    %c0_i32 = arith.constant 0 : i32
    %c0_i32_0 = arith.constant 0 : i32
    %c0_i32_1 = arith.constant 0 : i32
    return %c0_i32, %c0_i32_0 : i32, i32
  }
}

module attributes {stable_mosaic.version = 11 : i64} {
  func.func @_bn_apply_kernel(%arg0: i32, %arg1: memref<128x128xf32, #tpu.memory_space<vmem>>, %arg2: memref<1x128xf32, #tpu.memory_space<vmem>>, %arg3: memref<1x128xf32, #tpu.memory_space<vmem>>, %arg4: memref<128x128xbf16, #tpu.memory_space<vmem>>) attributes {dimension_semantics = [#tpu.dimension_semantics<parallel>], iteration_bounds = array<i64: 4>, scalar_prefetch = 0 : i64, scratch_operands = 0 : i64, tpu.core_type = #tpu.core_type<tc>, window_params = [{transform_indices = @transform_0, window_bounds = array<i64: 128, 128>}, {pipeline_mode = #tpu.pipeline_mode<synchronous>, transform_indices = @transform_1, window_bounds = array<i64: 1, 128>}, {pipeline_mode = #tpu.pipeline_mode<synchronous>, transform_indices = @transform_2, window_bounds = array<i64: 1, 128>}, {transform_indices = @transform_3, window_bounds = array<i64: 128, 128>}]} {
    %c0 = arith.constant 0 : index
    %c0_0 = arith.constant 0 : index
    %0 = vector.load %arg1[%c0, %c0_0] : memref<128x128xf32, #tpu.memory_space<vmem>>, vector<128x128xf32>
    %c0_1 = arith.constant 0 : index
    %c0_2 = arith.constant 0 : index
    %1 = vector.load %arg2[%c0_1, %c0_2] : memref<1x128xf32, #tpu.memory_space<vmem>>, vector<1x128xf32>
    %2 = vector.broadcast %1 : vector<1x128xf32> to vector<128x128xf32>
    %3 = arith.mulf %0, %2 : vector<128x128xf32>
    %c0_3 = arith.constant 0 : index
    %c0_4 = arith.constant 0 : index
    %4 = vector.load %arg3[%c0_3, %c0_4] : memref<1x128xf32, #tpu.memory_space<vmem>>, vector<1x128xf32>
    %5 = vector.broadcast %4 : vector<1x128xf32> to vector<128x128xf32>
    %6 = arith.addf %3, %5 : vector<128x128xf32>
    %cst = arith.constant 0.000000e+00 : f32
    %7 = vector.broadcast %cst : f32 to vector<128x128xf32>
    %8 = arith.maximumf %6, %7 : vector<128x128xf32>
    %9 = arith.truncf %8 : vector<128x128xf32> to vector<128x128xbf16>
    %c0_5 = arith.constant 0 : index
    %c0_6 = arith.constant 0 : index
    %10 = vector.load %arg4[%c0_5, %c0_6] : memref<128x128xbf16, #tpu.memory_space<vmem>>, vector<128x128xbf16>
    tpu.vector_store %arg4[%c0_5, %c0_6], %9 {strides = array<i32>} : memref<128x128xbf16, #tpu.memory_space<vmem>>, vector<128x128xbf16>,
    return
  }
  func.func @transform_0(%arg0: i32) -> (i32, i32) {
    %c0_i32 = arith.constant 0 : i32
    %c0_i32_0 = arith.constant 0 : i32
    return %arg0, %c0_i32 : i32, i32
  }
  func.func @transform_1(%arg0: i32) -> (i32, i32) {
    %c0_i32 = arith.constant 0 : i32
    %c0_i32_0 = arith.constant 0 : i32
    %c0_i32_1 = arith.constant 0 : i32
    return %c0_i32, %c0_i32_0 : i32, i32
  }
  func.func @transform_2(%arg0: i32) -> (i32, i32) {
    %c0_i32 = arith.constant 0 : i32
    %c0_i32_0 = arith.constant 0 : i32
    %c0_i32_1 = arith.constant 0 : i32
    return %c0_i32, %c0_i32_0 : i32, i32
  }
  func.func @transform_3(%arg0: i32) -> (i32, i32) {
    %c0_i32 = arith.constant 0 : i32
    %c0_i32_0 = arith.constant 0 : i32
    return %arg0, %c0_i32 : i32, i32
  }
}

module attributes {stable_mosaic.version = 11 : i64} {
  func.func @_conv_stats_kernel(%arg0: i32, %arg1: memref<128x72xbf16, #tpu.memory_space<vmem>>, %arg2: memref<72x128xbf16, #tpu.memory_space<vmem>>, %arg3: memref<128x128xf32, #tpu.memory_space<vmem>>, %arg4: memref<1x128xf32, #tpu.memory_space<vmem>>, %arg5: memref<1x128xf32, #tpu.memory_space<vmem>>) attributes {dimension_semantics = [#tpu.dimension_semantics<arbitrary>], iteration_bounds = array<i64: 4>, scalar_prefetch = 0 : i64, scratch_operands = 0 : i64, tpu.core_type = #tpu.core_type<tc>, window_params = [{transform_indices = @transform_0, window_bounds = array<i64: 128, 72>}, {pipeline_mode = #tpu.pipeline_mode<synchronous>, transform_indices = @transform_1, window_bounds = array<i64: 72, 128>}, {transform_indices = @transform_2, window_bounds = array<i64: 128, 128>}, {pipeline_mode = #tpu.pipeline_mode<synchronous>, transform_indices = @transform_3, window_bounds = array<i64: 1, 128>}, {pipeline_mode = #tpu.pipeline_mode<synchronous>, transform_indices = @transform_4, window_bounds = array<i64: 1, 128>}]} {
    %c0 = arith.constant 0 : index
    %c0_0 = arith.constant 0 : index
    %0 = vector.load %arg1[%c0, %c0_0] : memref<128x72xbf16, #tpu.memory_space<vmem>>, vector<128x72xbf16>
    %c0_1 = arith.constant 0 : index
    %c0_2 = arith.constant 0 : index
    %1 = vector.load %arg2[%c0_1, %c0_2] : memref<72x128xbf16, #tpu.memory_space<vmem>>, vector<72x128xbf16>
    %cst = arith.constant dense<0.000000e+00> : vector<128x128xf32>
    %2 = tpu.matmul %0, %1, %cst {dimension_numbers = #tpu.dot_dimension_numbers<[1], [0], [0], [1], [0, 0, 1, 1], [], []>} : vector<128x72xbf16>, vector<72x128xbf16>, vector<128x128xf32> -> vector<128x128xf32>
    %c0_3 = arith.constant 0 : index
    %c0_4 = arith.constant 0 : index
    %3 = vector.load %arg3[%c0_3, %c0_4] : memref<128x128xf32, #tpu.memory_space<vmem>>, vector<128x128xf32>
    tpu.vector_store %arg3[%c0_3, %c0_4], %2 {strides = array<i32>} : memref<128x128xf32, #tpu.memory_space<vmem>>, vector<128x128xf32>,
    %c0_i32 = arith.constant 0 : i32
    %4 = arith.cmpi eq, %arg0, %c0_i32 : i32
    %5 = arith.extui %4 : i1 to i32
    %c0_i32_5 = arith.constant 0 : i32
    %6 = arith.cmpi ne, %5, %c0_i32_5 : i32
    scf.if %6 {
      %cst_16 = arith.constant 0.000000e+00 : f32
      %18 = vector.broadcast %cst_16 : f32 to vector<1x128xf32>
      %c0_17 = arith.constant 0 : index
      %c0_18 = arith.constant 0 : index
      %19 = vector.load %arg4[%c0_17, %c0_18] : memref<1x128xf32, #tpu.memory_space<vmem>>, vector<1x128xf32>
      tpu.vector_store %arg4[%c0_17, %c0_18], %18 {strides = array<i32>} : memref<1x128xf32, #tpu.memory_space<vmem>>, vector<1x128xf32>,
      %cst_19 = arith.constant 0.000000e+00 : f32
      %20 = vector.broadcast %cst_19 : f32 to vector<1x128xf32>
      %c0_20 = arith.constant 0 : index
      %c0_21 = arith.constant 0 : index
      %21 = vector.load %arg5[%c0_20, %c0_21] : memref<1x128xf32, #tpu.memory_space<vmem>>, vector<1x128xf32>
      tpu.vector_store %arg5[%c0_20, %c0_21], %20 {strides = array<i32>} : memref<1x128xf32, #tpu.memory_space<vmem>>, vector<1x128xf32>,
    } else {
    }
    %c0_6 = arith.constant 0 : index
    %c0_7 = arith.constant 0 : index
    %7 = vector.load %arg4[%c0_6, %c0_7] : memref<1x128xf32, #tpu.memory_space<vmem>>, vector<1x128xf32>
    %cst_8 = arith.constant dense<0.000000e+00> : vector<128xf32>
    %8 = vector.multi_reduction <add>, %2, %cst_8 [0] : vector<128x128xf32> to vector<128xf32>
    %9 = vector.shape_cast %8 : vector<128xf32> to vector<1x128xf32>
    %10 = arith.addf %7, %9 : vector<1x128xf32>
    %c0_9 = arith.constant 0 : index
    %c0_10 = arith.constant 0 : index
    %11 = vector.load %arg4[%c0_9, %c0_10] : memref<1x128xf32, #tpu.memory_space<vmem>>, vector<1x128xf32>
    tpu.vector_store %arg4[%c0_9, %c0_10], %10 {strides = array<i32>} : memref<1x128xf32, #tpu.memory_space<vmem>>, vector<1x128xf32>,
    %c0_11 = arith.constant 0 : index
    %c0_12 = arith.constant 0 : index
    %12 = vector.load %arg5[%c0_11, %c0_12] : memref<1x128xf32, #tpu.memory_space<vmem>>, vector<1x128xf32>
    %13 = arith.mulf %2, %2 : vector<128x128xf32>
    %cst_13 = arith.constant dense<0.000000e+00> : vector<128xf32>
    %14 = vector.multi_reduction <add>, %13, %cst_13 [0] : vector<128x128xf32> to vector<128xf32>
    %15 = vector.shape_cast %14 : vector<128xf32> to vector<1x128xf32>
    %16 = arith.addf %12, %15 : vector<1x128xf32>
    %c0_14 = arith.constant 0 : index
    %c0_15 = arith.constant 0 : index
    %17 = vector.load %arg5[%c0_14, %c0_15] : memref<1x128xf32, #tpu.memory_space<vmem>>, vector<1x128xf32>
    tpu.vector_store %arg5[%c0_14, %c0_15], %16 {strides = array<i32>} : memref<1x128xf32, #tpu.memory_space<vmem>>, vector<1x128xf32>,
    return
  }
  func.func @transform_0(%arg0: i32) -> (i32, i32) {
    %c0_i32 = arith.constant 0 : i32
    %c0_i32_0 = arith.constant 0 : i32
    return %arg0, %c0_i32 : i32, i32
  }
  func.func @transform_1(%arg0: i32) -> (i32, i32) {
    %c0_i32 = arith.constant 0 : i32
    %c0_i32_0 = arith.constant 0 : i32
    %c0_i32_1 = arith.constant 0 : i32
    return %c0_i32, %c0_i32_0 : i32, i32
  }
  func.func @transform_2(%arg0: i32) -> (i32, i32) {
    %c0_i32 = arith.constant 0 : i32
    %c0_i32_0 = arith.constant 0 : i32
    return %arg0, %c0_i32 : i32, i32
  }
  func.func @transform_3(%arg0: i32) -> (i32, i32) {
    %c0_i32 = arith.constant 0 : i32
    %c0_i32_0 = arith.constant 0 : i32
    %c0_i32_1 = arith.constant 0 : i32
    return %c0_i32, %c0_i32_0 : i32, i32
  }
  func.func @transform_4(%arg0: i32) -> (i32, i32) {
    %c0_i32 = arith.constant 0 : i32
    %c0_i32_0 = arith.constant 0 : i32
    %c0_i32_1 = arith.constant 0 : i32
    return %c0_i32, %c0_i32_0 : i32, i32
  }
}

module attributes {stable_mosaic.version = 11 : i64} {
  func.func @_conv_stats_kernel(%arg0: i32, %arg1: memref<128x4xbf16, #tpu.memory_space<vmem>>, %arg2: memref<4x128xbf16, #tpu.memory_space<vmem>>, %arg3: memref<128x128xf32, #tpu.memory_space<vmem>>, %arg4: memref<1x128xf32, #tpu.memory_space<vmem>>, %arg5: memref<1x128xf32, #tpu.memory_space<vmem>>) attributes {dimension_semantics = [#tpu.dimension_semantics<arbitrary>], iteration_bounds = array<i64: 4>, scalar_prefetch = 0 : i64, scratch_operands = 0 : i64, tpu.core_type = #tpu.core_type<tc>, window_params = [{transform_indices = @transform_0, window_bounds = array<i64: 128, 4>}, {pipeline_mode = #tpu.pipeline_mode<synchronous>, transform_indices = @transform_1, window_bounds = array<i64: 4, 128>}, {transform_indices = @transform_2, window_bounds = array<i64: 128, 128>}, {pipeline_mode = #tpu.pipeline_mode<synchronous>, transform_indices = @transform_3, window_bounds = array<i64: 1, 128>}, {pipeline_mode = #tpu.pipeline_mode<synchronous>, transform_indices = @transform_4, window_bounds = array<i64: 1, 128>}]} {
    %c0 = arith.constant 0 : index
    %c0_0 = arith.constant 0 : index
    %0 = vector.load %arg1[%c0, %c0_0] : memref<128x4xbf16, #tpu.memory_space<vmem>>, vector<128x4xbf16>
    %c0_1 = arith.constant 0 : index
    %c0_2 = arith.constant 0 : index
    %1 = vector.load %arg2[%c0_1, %c0_2] : memref<4x128xbf16, #tpu.memory_space<vmem>>, vector<4x128xbf16>
    %cst = arith.constant dense<0.000000e+00> : vector<128x128xf32>
    %2 = tpu.matmul %0, %1, %cst {dimension_numbers = #tpu.dot_dimension_numbers<[1], [0], [0], [1], [0, 0, 1, 1], [], []>} : vector<128x4xbf16>, vector<4x128xbf16>, vector<128x128xf32> -> vector<128x128xf32>
    %c0_3 = arith.constant 0 : index
    %c0_4 = arith.constant 0 : index
    %3 = vector.load %arg3[%c0_3, %c0_4] : memref<128x128xf32, #tpu.memory_space<vmem>>, vector<128x128xf32>
    tpu.vector_store %arg3[%c0_3, %c0_4], %2 {strides = array<i32>} : memref<128x128xf32, #tpu.memory_space<vmem>>, vector<128x128xf32>,
    %c0_i32 = arith.constant 0 : i32
    %4 = arith.cmpi eq, %arg0, %c0_i32 : i32
    %5 = arith.extui %4 : i1 to i32
    %c0_i32_5 = arith.constant 0 : i32
    %6 = arith.cmpi ne, %5, %c0_i32_5 : i32
    scf.if %6 {
      %cst_16 = arith.constant 0.000000e+00 : f32
      %18 = vector.broadcast %cst_16 : f32 to vector<1x128xf32>
      %c0_17 = arith.constant 0 : index
      %c0_18 = arith.constant 0 : index
      %19 = vector.load %arg4[%c0_17, %c0_18] : memref<1x128xf32, #tpu.memory_space<vmem>>, vector<1x128xf32>
      tpu.vector_store %arg4[%c0_17, %c0_18], %18 {strides = array<i32>} : memref<1x128xf32, #tpu.memory_space<vmem>>, vector<1x128xf32>,
      %cst_19 = arith.constant 0.000000e+00 : f32
      %20 = vector.broadcast %cst_19 : f32 to vector<1x128xf32>
      %c0_20 = arith.constant 0 : index
      %c0_21 = arith.constant 0 : index
      %21 = vector.load %arg5[%c0_20, %c0_21] : memref<1x128xf32, #tpu.memory_space<vmem>>, vector<1x128xf32>
      tpu.vector_store %arg5[%c0_20, %c0_21], %20 {strides = array<i32>} : memref<1x128xf32, #tpu.memory_space<vmem>>, vector<1x128xf32>,
    } else {
    }
    %c0_6 = arith.constant 0 : index
    %c0_7 = arith.constant 0 : index
    %7 = vector.load %arg4[%c0_6, %c0_7] : memref<1x128xf32, #tpu.memory_space<vmem>>, vector<1x128xf32>
    %cst_8 = arith.constant dense<0.000000e+00> : vector<128xf32>
    %8 = vector.multi_reduction <add>, %2, %cst_8 [0] : vector<128x128xf32> to vector<128xf32>
    %9 = vector.shape_cast %8 : vector<128xf32> to vector<1x128xf32>
    %10 = arith.addf %7, %9 : vector<1x128xf32>
    %c0_9 = arith.constant 0 : index
    %c0_10 = arith.constant 0 : index
    %11 = vector.load %arg4[%c0_9, %c0_10] : memref<1x128xf32, #tpu.memory_space<vmem>>, vector<1x128xf32>
    tpu.vector_store %arg4[%c0_9, %c0_10], %10 {strides = array<i32>} : memref<1x128xf32, #tpu.memory_space<vmem>>, vector<1x128xf32>,
    %c0_11 = arith.constant 0 : index
    %c0_12 = arith.constant 0 : index
    %12 = vector.load %arg5[%c0_11, %c0_12] : memref<1x128xf32, #tpu.memory_space<vmem>>, vector<1x128xf32>
    %13 = arith.mulf %2, %2 : vector<128x128xf32>
    %cst_13 = arith.constant dense<0.000000e+00> : vector<128xf32>
    %14 = vector.multi_reduction <add>, %13, %cst_13 [0] : vector<128x128xf32> to vector<128xf32>
    %15 = vector.shape_cast %14 : vector<128xf32> to vector<1x128xf32>
    %16 = arith.addf %12, %15 : vector<1x128xf32>
    %c0_14 = arith.constant 0 : index
    %c0_15 = arith.constant 0 : index
    %17 = vector.load %arg5[%c0_14, %c0_15] : memref<1x128xf32, #tpu.memory_space<vmem>>, vector<1x128xf32>
    tpu.vector_store %arg5[%c0_14, %c0_15], %16 {strides = array<i32>} : memref<1x128xf32, #tpu.memory_space<vmem>>, vector<1x128xf32>,
    return
  }
  func.func @transform_0(%arg0: i32) -> (i32, i32) {
    %c0_i32 = arith.constant 0 : i32
    %c0_i32_0 = arith.constant 0 : i32
    return %arg0, %c0_i32 : i32, i32
  }
  func.func @transform_1(%arg0: i32) -> (i32, i32) {
    %c0_i32 = arith.constant 0 : i32
    %c0_i32_0 = arith.constant 0 : i32
    %c0_i32_1 = arith.constant 0 : i32
    return %c0_i32, %c0_i32_0 : i32, i32
  }
  func.func @transform_2(%arg0: i32) -> (i32, i32) {
    %c0_i32 = arith.constant 0 : i32
    %c0_i32_0 = arith.constant 0 : i32
    return %arg0, %c0_i32 : i32, i32
  }
  func.func @transform_3(%arg0: i32) -> (i32, i32) {
    %c0_i32 = arith.constant 0 : i32
    %c0_i32_0 = arith.constant 0 : i32
    %c0_i32_1 = arith.constant 0 : i32
    return %c0_i32, %c0_i32_0 : i32, i32
  }
  func.func @transform_4(%arg0: i32) -> (i32, i32) {
    %c0_i32 = arith.constant 0 : i32
    %c0_i32_0 = arith.constant 0 : i32
    %c0_i32_1 = arith.constant 0 : i32
    return %c0_i32, %c0_i32_0 : i32, i32
  }
}

module attributes {stable_mosaic.version = 11 : i64} {
  func.func @_bn_apply_kernel(%arg0: i32, %arg1: memref<128x128xf32, #tpu.memory_space<vmem>>, %arg2: memref<1x128xf32, #tpu.memory_space<vmem>>, %arg3: memref<1x128xf32, #tpu.memory_space<vmem>>, %arg4: memref<128x128xf32, #tpu.memory_space<vmem>>, %arg5: memref<1x128xf32, #tpu.memory_space<vmem>>, %arg6: memref<1x128xf32, #tpu.memory_space<vmem>>, %arg7: memref<128x128xf32, #tpu.memory_space<vmem>>) attributes {dimension_semantics = [#tpu.dimension_semantics<parallel>], iteration_bounds = array<i64: 4>, scalar_prefetch = 0 : i64, scratch_operands = 0 : i64, tpu.core_type = #tpu.core_type<tc>, window_params = [{transform_indices = @transform_0, window_bounds = array<i64: 128, 128>}, {pipeline_mode = #tpu.pipeline_mode<synchronous>, transform_indices = @transform_1, window_bounds = array<i64: 1, 128>}, {pipeline_mode = #tpu.pipeline_mode<synchronous>, transform_indices = @transform_2, window_bounds = array<i64: 1, 128>}, {transform_indices = @transform_3, window_bounds = array<i64: 128, 128>}, {pipeline_mode = #tpu.pipeline_mode<synchronous>, transform_indices = @transform_4, window_bounds = array<i64: 1, 128>}, {pipeline_mode = #tpu.pipeline_mode<synchronous>, transform_indices = @transform_5, window_bounds = array<i64: 1, 128>}, {transform_indices = @transform_6, window_bounds = array<i64: 128, 128>}]} {
    %c0 = arith.constant 0 : index
    %c0_0 = arith.constant 0 : index
    %0 = vector.load %arg1[%c0, %c0_0] : memref<128x128xf32, #tpu.memory_space<vmem>>, vector<128x128xf32>
    %c0_1 = arith.constant 0 : index
    %c0_2 = arith.constant 0 : index
    %1 = vector.load %arg2[%c0_1, %c0_2] : memref<1x128xf32, #tpu.memory_space<vmem>>, vector<1x128xf32>
    %2 = vector.broadcast %1 : vector<1x128xf32> to vector<128x128xf32>
    %3 = arith.mulf %0, %2 : vector<128x128xf32>
    %c0_3 = arith.constant 0 : index
    %c0_4 = arith.constant 0 : index
    %4 = vector.load %arg3[%c0_3, %c0_4] : memref<1x128xf32, #tpu.memory_space<vmem>>, vector<1x128xf32>
    %5 = vector.broadcast %4 : vector<1x128xf32> to vector<128x128xf32>
    %6 = arith.addf %3, %5 : vector<128x128xf32>
    %c0_5 = arith.constant 0 : index
    %c0_6 = arith.constant 0 : index
    %7 = vector.load %arg4[%c0_5, %c0_6] : memref<128x128xf32, #tpu.memory_space<vmem>>, vector<128x128xf32>
    %c0_7 = arith.constant 0 : index
    %c0_8 = arith.constant 0 : index
    %8 = vector.load %arg5[%c0_7, %c0_8] : memref<1x128xf32, #tpu.memory_space<vmem>>, vector<1x128xf32>
    %9 = vector.broadcast %8 : vector<1x128xf32> to vector<128x128xf32>
    %10 = arith.mulf %7, %9 : vector<128x128xf32>
    %c0_9 = arith.constant 0 : index
    %c0_10 = arith.constant 0 : index
    %11 = vector.load %arg6[%c0_9, %c0_10] : memref<1x128xf32, #tpu.memory_space<vmem>>, vector<1x128xf32>
    %12 = vector.broadcast %11 : vector<1x128xf32> to vector<128x128xf32>
    %13 = arith.addf %10, %12 : vector<128x128xf32>
    %14 = arith.addf %6, %13 : vector<128x128xf32>
    %cst = arith.constant 0.000000e+00 : f32
    %15 = vector.broadcast %cst : f32 to vector<128x128xf32>
    %16 = arith.maximumf %14, %15 : vector<128x128xf32>
    %c0_11 = arith.constant 0 : index
    %c0_12 = arith.constant 0 : index
    %17 = vector.load %arg7[%c0_11, %c0_12] : memref<128x128xf32, #tpu.memory_space<vmem>>, vector<128x128xf32>
    tpu.vector_store %arg7[%c0_11, %c0_12], %16 {strides = array<i32>} : memref<128x128xf32, #tpu.memory_space<vmem>>, vector<128x128xf32>,
    return
  }
  func.func @transform_0(%arg0: i32) -> (i32, i32) {
    %c0_i32 = arith.constant 0 : i32
    %c0_i32_0 = arith.constant 0 : i32
    return %arg0, %c0_i32 : i32, i32
  }
  func.func @transform_1(%arg0: i32) -> (i32, i32) {
    %c0_i32 = arith.constant 0 : i32
    %c0_i32_0 = arith.constant 0 : i32
    %c0_i32_1 = arith.constant 0 : i32
    return %c0_i32, %c0_i32_0 : i32, i32
  }
  func.func @transform_2(%arg0: i32) -> (i32, i32) {
    %c0_i32 = arith.constant 0 : i32
    %c0_i32_0 = arith.constant 0 : i32
    %c0_i32_1 = arith.constant 0 : i32
    return %c0_i32, %c0_i32_0 : i32, i32
  }
  func.func @transform_3(%arg0: i32) -> (i32, i32) {
    %c0_i32 = arith.constant 0 : i32
    %c0_i32_0 = arith.constant 0 : i32
    return %arg0, %c0_i32 : i32, i32
  }
  func.func @transform_4(%arg0: i32) -> (i32, i32) {
    %c0_i32 = arith.constant 0 : i32
    %c0_i32_0 = arith.constant 0 : i32
    %c0_i32_1 = arith.constant 0 : i32
    return %c0_i32, %c0_i32_0 : i32, i32
  }
  func.func @transform_5(%arg0: i32) -> (i32, i32) {
    %c0_i32 = arith.constant 0 : i32
    %c0_i32_0 = arith.constant 0 : i32
    %c0_i32_1 = arith.constant 0 : i32
    return %c0_i32, %c0_i32_0 : i32, i32
  }
  func.func @transform_6(%arg0: i32) -> (i32, i32) {
    %c0_i32 = arith.constant 0 : i32
    %c0_i32_0 = arith.constant 0 : i32
    return %arg0, %c0_i32 : i32, i32
  }
}

</mosaic_0001>

<llo_original>
// kernel: masked_basic_block.6
$region0: #{masked_basic_block.6}
  #allocation0 [shape = 'u32[]', space=smem, size = 0x4, offset = 0x4, fixed_abs, tag = 'smem constant byte address 0x4 - core index']
  #allocation1 [shape = 'u32[144,128]{1,0:T(1,128)}', space=vmem, size = 0x12000, scoped, tag = 'internal scratch']
  %s0 = inlined_call_operand.vmem [shape: f32[512,128], index: 0, kind: input, shape index: {}]
  %s1 = inlined_call_operand.vmem [shape: f32[1,128], index: 1, kind: input, shape index: {}]
  %s2 = inlined_call_operand.vmem [shape: f32[1,128], index: 2, kind: input, shape index: {}]
  %s3 = inlined_call_operand.vmem [shape: bf16[512,128], index: 3, kind: output, shape index: {}]
  %s4 = sld [smem:[#allocation0]]
  $region45: #{masked_basic_block.6} parent=0
    _
  %s6 = ssub.s32 1, %s4
  %s7 = scalar_select 0, %s6, %s4
  loop: start=0, step=1, limit=6
  $region2: #{masked_basic_block.6} parent=0 // loop_pre_header
    _
  $region3: #{masked_basic_block.6} parent=0 // loop_header
    %s9 = sphi 0, %s13
    %p10 = scmp.ge.s32.totalorder %s9, 6
    %s19 = sphi 0, %s21
    %s22 = sphi 0, %s19
    %s23 = sphi 0, %s22
    %s39 = sphi 0, %s23
    %s43 = sphi 0, %s43
    %s45 = sphi 0, %s43
    %s46 = sphi 0, %s45
    %s60 = sphi 0, %s46
    %s64 = sphi 0, %s64
    %s66 = sphi 0, %s64
    %s67 = sphi 0, %s66
    %s81 = sphi 0, %s67
    %s87 = sphi 0, %s89
    %s90 = sphi 0, %s87
    %s91 = sphi 0, %s90
    %s107 = sphi 0, %s91
  $region4: #{masked_basic_block.6} parent=0 // loop_header_branch
    %12 = sbr.rel (%p10) target = $region8
  $region5: #{masked_basic_block.6} parent=0 // loop_body
    %s14 = ssub.s32 %s9, 1
    %s15 = ssub.s32 %s9, 2
    %s16 = sadd.s32 %s9, 1
    %s17 = ssub.s32 %s9, %s16
    %p18 = scmp.eq.s32.totalorder %s17, 0
    %s20 = sadd.s32 %s19, 1
    %s21 = scalar_select %p18, %s19, %s20
    %p24 = pneg %p18
    %p25 = scmp.eq.s32.totalorder %s9, 3
    %p26 = por %p24, %p25
    %p27 = scmp.ne.s32.totalorder %s19, %s22
    %p28 = scmp.eq.s32.totalorder %s9, 0
    %p29 = por %p27, %p28
    %p30 = scmp.ne.s32.totalorder %s19, %s22
    %p31 = scmp.eq.s32.totalorder %s14, 3
    %p32 = por %p30, %p31
    %p33 = scmp.ne.s32.totalorder %s22, %s23
    %p34 = scmp.eq.s32.totalorder %s14, 0
    %p35 = por %p33, %p34
    %p36 = scmp.ne.s32.totalorder %s22, %s23
    %p37 = scmp.eq.s32.totalorder %s15, 3
    %p38 = por %p36, %p37
    %p40 = scmp.ne.s32.totalorder %s23, %s39
    %p41 = scmp.eq.s32.totalorder %s15, 0
    %p42 = por %p40, %p41
    %s44 = sadd.s32 %s43, 1
    %p47 = scmp.eq.s32.totalorder %s9, 3
    %p48 = scmp.ne.s32.totalorder %s43, %s45
    %p49 = scmp.eq.s32.totalorder %s9, 0
    %p50 = por %p48, %p49
    %p51 = scmp.ne.s32.totalorder %s43, %s45
    %p52 = scmp.eq.s32.totalorder %s14, 3
    %p53 = por %p51, %p52
    %p54 = scmp.ne.s32.totalorder %s45, %s46
    %p55 = scmp.eq.s32.totalorder %s14, 0
    %p56 = por %p54, %p55
    %p57 = scmp.ne.s32.totalorder %s45, %s46
    %p58 = scmp.eq.s32.totalorder %s15, 3
    %p59 = por %p57, %p58
    %p61 = scmp.ne.s32.totalorder %s46, %s60
    %p62 = scmp.eq.s32.totalorder %s15, 0
    %p63 = por %p61, %p62
    %s65 = sadd.s32 %s64, 1
    %p68 = scmp.eq.s32.totalorder %s9, 3
    %p69 = scmp.ne.s32.totalorder %s64, %s66
    %p70 = scmp.eq.s32.totalorder %s9, 0
    %p71 = por %p69, %p70
    %p72 = scmp.ne.s32.totalorder %s64, %s66
    %p73 = scmp.eq.s32.totalorder %s14, 3
    %p74 = por %p72, %p73
    %p75 = scmp.ne.s32.totalorder %s66, %s67
    %p76 = scmp.eq.s32.totalorder %s14, 0
    %p77 = por %p75, %p76
    %p78 = scmp.ne.s32.totalorder %s66, %s67
    %p79 = scmp.eq.s32.totalorder %s15, 3
    %p80 = por %p78, %p79
    %p82 = scmp.ne.s32.totalorder %s67, %s81
    %p83 = scmp.eq.s32.totalorder %s15, 0
    %p84 = por %p82, %p83
    %s85 = ssub.s32 %s9, %s16
    %p86 = scmp.eq.s32.totalorder %s85, 0
    %s88 = sadd.s32 %s87, 1
    %s89 = scalar_select %p86, %s87, %s88
    %p92 = pneg %p86
    %p93 = scmp.eq.s32.totalorder %s9, 3
    %p94 = por %p92, %p93
    %p95 = scmp.ne.s32.totalorder %s87, %s90
    %p96 = scmp.eq.s32.totalorder %s9, 0
    %p97 = por %p95, %p96
    %p98 = scmp.ne.s32.totalorder %s87, %s90
    %p99 = scmp.eq.s32.totalorder %s14, 3
    %p100 = por %p98, %p99
    %p101 = scmp.ne.s32.totalorder %s90, %s91
    %p102 = scmp.eq.s32.totalorder %s14, 0
    %p103 = por %p101, %p102
    %p104 = scmp.ne.s32.totalorder %s90, %s91
    %p105 = scmp.eq.s32.totalorder %s15, 3
    %p106 = por %p104, %p105
    %p108 = scmp.ne.s32.totalorder %s91, %s107
    %p109 = scmp.eq.s32.totalorder %s15, 0
    %p110 = por %p108, %p109
    %p111 = scmp.le.s32.totalorder 1, %s9
    %p112 = scmp.lt.s32.totalorder %s9, 5
    %p113 = pnand %p111, %p112
    %p114 = pneg %p113
    // Predicated region
    $region9: #{masked_basic_block.6} parent=5 // pred_check
      _
    $region10: #{masked_basic_block.6} parent=5 // pred_check_branch
      %116 = sbr.rel (%p113) target = $region12
    $region11: #{masked_basic_block.6} parent=5 // pred_region
      %s117 = ssub.s32 %s9, 1
      // Predicated region
      $region13: #{masked_basic_block.6} parent=11 // pred_check
        %p118 = pneg %p56
      $region14: #{masked_basic_block.6} parent=11 // pred_check_branch
        %120 = sbr.rel (%p118) target = $region16
      $region15: #{masked_basic_block.6} parent=11 // pred_region
        _
      $region16: #{masked_basic_block.6} parent=11 // pred_fallthru
        _
      // Predicated region
      $region17: #{masked_basic_block.6} parent=11 // pred_check
        %p121 = pneg %p77
      $region18: #{masked_basic_block.6} parent=11 // pred_check_branch
        %123 = sbr.rel (%p121) target = $region20
      $region19: #{masked_basic_block.6} parent=11 // pred_region
        _
      $region20: #{masked_basic_block.6} parent=11 // pred_fallthru
        _
    $region12: #{masked_basic_block.6} parent=5 // pred_fallthru
      _
    %p124 = scmp.lt.s32.totalorder %s9, 4
    // Predicated region
    $region21: #{masked_basic_block.6} parent=5 // pred_check
      %p125 = pneg %p124
    $region22: #{masked_basic_block.6} parent=5 // pred_check_branch
      %127 = sbr.rel (%p125) target = $region24
    $region23: #{masked_basic_block.6} parent=5 // pred_region
      // Predicated region
      $region25: #{masked_basic_block.6} parent=23 // pred_check
        %p128 = pneg %p29
      $region26: #{masked_basic_block.6} parent=23 // pred_check_branch
        %130 = sbr.rel (%p128) target = $region28
      $region27: #{masked_basic_block.6} parent=23 // pred_region
        %s131 = smul.u32 16, %s9
        %p132 = scmp.lt.s32.totalorder %s131, 63
        %s133 = scalar_select %p132, %s131, 63
        %s134 = smul.addr %s133, 8
        %s135 = scalar_lea.vmem %s0, %s134
        %s136 = smul.u32 16, %s9
      $region28: #{masked_basic_block.6} parent=23 // pred_fallthru
        _
    $region24: #{masked_basic_block.6} parent=5 // pred_fallthru
      _
    %p137 = scmp.le.s32.totalorder 1, %s9
    %p138 = scmp.lt.s32.totalorder %s9, 5
    %p139 = pnand %p137, %p138
    %p140 = pneg %p139
    // Predicated region
    $region29: #{masked_basic_block.6} parent=5 // pred_check
      _
    $region30: #{masked_basic_block.6} parent=5 // pred_check_branch
      %142 = sbr.rel (%p139) target = $region32
    $region31: #{masked_basic_block.6} parent=5 // pred_region
      %s143 = ssub.s32 %s9, 1
      %s144 = smul.u32 16, %s14
      %p145 = scmp.lt.s32.totalorder %s144, 63
      %s146 = scalar_select %p145, %s144, 63
      %s147 = smul.addr %s146, 8
      %s148 = scalar_lea.vmem %s0, %s147
      %p149 = pneg %p35
      %p150 = pneg %p32
      %p151 = pneg %p56
      %p152 = pneg %p53
      %p153 = pneg %p77
      %p154 = pneg %p74
      %p155 = pneg %p103
      %p156 = pneg %p100
      %s157 = smul.u32 16, %s14
      %p158 = scmp.lt.s32.totalorder %s157, 63
      %s159 = scalar_select %p158, %s157, 63
      %s160 = smul.addr %s159, 4
      %s161 = scalar_lea.vmem %s3, %s160
      %s162 = smul.u32 16, %s14
      %p163 = scmp.lt.s32.totalorder %s162, 63
      %s164 = scalar_select %p163, %s162, 63
      %s165 = smul.addr %s164, 8
      %s166 = scalar_lea.vmem %s0, %s165
      %s167 = smul.u32 16, %s14
      %s168 = smul.u32 16, %s14
      %p169 = scmp.lt.s32.totalorder %s168, 63
      %s170 = scalar_select %p169, %s168, 63
      %s171 = smul.addr %s170, 4
      %s172 = scalar_lea.vmem %s3, %s171
      %s173 = smul.u32 16, %s14
      %v174 = vld [vmem:[%s166] sm:$0xff]
      %v175 = vld [vmem:[%s166 + $0x8] sm:$0xff]
      %v176 = vld [vmem:[%s166 + $0x10] sm:$0xff]
      %v177 = vld [vmem:[%s166 + $0x18] sm:$0xff]
      %v178 = vld [vmem:[%s166 + $0x20] sm:$0xff]
      %v179 = vld [vmem:[%s166 + $0x28] sm:$0xff]
      %v180 = vld [vmem:[%s166 + $0x30] sm:$0xff]
      %v181 = vld [vmem:[%s166 + $0x38] sm:$0xff]
      %v182 = vld [vmem:[%s166 + $0x40] sm:$0xff]
      %v183 = vld [vmem:[%s166 + $0x48] sm:$0xff]
      %v184 = vld [vmem:[%s166 + $0x50] sm:$0xff]
      %v185 = vld [vmem:[%s166 + $0x58] sm:$0xff]
      %v186 = vld [vmem:[%s166 + $0x60] sm:$0xff]
      %v187 = vld [vmem:[%s166 + $0x68] sm:$0xff]
      %v188 = vld [vmem:[%s166 + $0x70] sm:$0xff]
      %v189 = vld [vmem:[%s166 + $0x78] sm:$0xff]
      %v190 = vld [vmem:[%s1] sm:$0x1]
      %v192 = vlaneseq
      %v193 = vshrl.u32 %v192, 7
      %v194 = vsub.s32 0, %v193
      %v195 = vrot.slane %v190, %v194
      %v197 = vmul.f32 %v174, %v195
      %v198 = vmul.f32 %v175, %v195
      %v199 = vmul.f32 %v176, %v195
      %v200 = vmul.f32 %v177, %v195
      %v201 = vmul.f32 %v178, %v195
      %v202 = vmul.f32 %v179, %v195
      %v203 = vmul.f32 %v180, %v195
      %v204 = vmul.f32 %v181, %v195
      %v205 = vmul.f32 %v182, %v195
      %v206 = vmul.f32 %v183, %v195
      %v207 = vmul.f32 %v184, %v195
      %v208 = vmul.f32 %v185, %v195
      %v209 = vmul.f32 %v186, %v195
      %v210 = vmul.f32 %v187, %v195
      %v211 = vmul.f32 %v188, %v195
      %v212 = vmul.f32 %v189, %v195
      %v213 = vld [vmem:[%s2] sm:$0x1]
      %v215 = vlaneseq
      %v216 = vshrl.u32 %v215, 7
      %v217 = vsub.s32 0, %v216
      %v218 = vrot.slane %v213, %v217
      %v220 = vadd.f32 %v197, %v218
      %v221 = vadd.f32 %v198, %v218
      %v222 = vadd.f32 %v199, %v218
      %v223 = vadd.f32 %v200, %v218
      %v224 = vadd.f32 %v201, %v218
      %v225 = vadd.f32 %v202, %v218
      %v226 = vadd.f32 %v203, %v218
      %v227 = vadd.f32 %v204, %v218
      %v228 = vadd.f32 %v205, %v218
      %v229 = vadd.f32 %v206, %v218
      %v230 = vadd.f32 %v207, %v218
      %v231 = vadd.f32 %v208, %v218
      %v232 = vadd.f32 %v209, %v218
      %v233 = vadd.f32 %v210, %v218
      %v234 = vadd.f32 %v211, %v218
      %v235 = vadd.f32 %v212, %v218
      %v236 = vmax.f32 %v220, 0.0
      %v237 = vmax.f32 %v221, 0.0
      %v238 = vmax.f32 %v222, 0.0
      %v239 = vmax.f32 %v223, 0.0
      %v240 = vmax.f32 %v224, 0.0
      %v241 = vmax.f32 %v225, 0.0
      %v242 = vmax.f32 %v226, 0.0
      %v243 = vmax.f32 %v227, 0.0
      %v244 = vmax.f32 %v228, 0.0
      %v245 = vmax.f32 %v229, 0.0
      %v246 = vmax.f32 %v230, 0.0
      %v247 = vmax.f32 %v231, 0.0
      %v248 = vmax.f32 %v232, 0.0
      %v249 = vmax.f32 %v233, 0.0
      %v250 = vmax.f32 %v234, 0.0
      %v251 = vmax.f32 %v235, 0.0
      %v252 = vpack.c.bf16 %v237, %v236
      %v253 = vpack.c.bf16 %v239, %v238
      %v254 = vpack.c.bf16 %v241, %v240
      %v255 = vpack.c.bf16 %v243, %v242
      %v256 = vpack.c.bf16 %v245, %v244
      %v257 = vpack.c.bf16 %v247, %v246
      %v258 = vpack.c.bf16 %v249, %v248
      %v259 = vpack.c.bf16 %v251, %v250
      %v268 = vunpack.c.l.b16 %v252
      %v269 = vunpack.c.h.b16 %v252
      %v270 = vunpack.c.l.b16 %v253
      %v271 = vunpack.c.h.b16 %v253
      %v272 = vunpack.c.l.b16 %v254
      %v273 = vunpack.c.h.b16 %v254
      %v274 = vunpack.c.l.b16 %v255
      %v275 = vunpack.c.h.b16 %v255
      %v276 = vunpack.c.l.b16 %v256
      %v277 = vunpack.c.h.b16 %v256
      %v278 = vunpack.c.l.b16 %v257
      %v279 = vunpack.c.h.b16 %v257
      %v280 = vunpack.c.l.b16 %v258
      %v281 = vunpack.c.h.b16 %v258
      %v282 = vunpack.c.l.b16 %v259
      %v283 = vunpack.c.h.b16 %v259
      %v284 = vpack.c.b16 %v268, %v268
      %v285 = vpack.c.b16 %v269, %v269
      %v286 = vpack.c.b16 %v270, %v270
      %v287 = vpack.c.b16 %v271, %v271
      %v288 = vpack.c.b16 %v272, %v272
      %v289 = vpack.c.b16 %v273, %v273
      %v290 = vpack.c.b16 %v274, %v274
      %v291 = vpack.c.b16 %v275, %v275
      %v292 = vpack.c.b16 %v276, %v276
      %v293 = vpack.c.b16 %v277, %v277
      %v294 = vpack.c.b16 %v278, %v278
      %v295 = vpack.c.b16 %v279, %v279
      %v296 = vpack.c.b16 %v280, %v280
      %v297 = vpack.c.b16 %v281, %v281
      %v298 = vpack.c.b16 %v282, %v282
      %v299 = vpack.c.b16 %v283, %v283
      %316 = vst [vmem:[%s172] sm:$0xf] %v284
      %317 = vst [vmem:[%s172 + $0x4] sm:$0xf] %v285
      %318 = vst [vmem:[%s172 + $0x8] sm:$0xf] %v286
      %319 = vst [vmem:[%s172 + $0xc] sm:$0xf] %v287
      %320 = vst [vmem:[%s172 + $0x10] sm:$0xf] %v288
      %321 = vst [vmem:[%s172 + $0x14] sm:$0xf] %v289
      %322 = vst [vmem:[%s172 + $0x18] sm:$0xf] %v290
      %323 = vst [vmem:[%s172 + $0x1c] sm:$0xf] %v291
      %324 = vst [vmem:[%s172 + $0x20] sm:$0xf] %v292
      %325 = vst [vmem:[%s172 + $0x24] sm:$0xf] %v293
      %326 = vst [vmem:[%s172 + $0x28] sm:$0xf] %v294
      %327 = vst [vmem:[%s172 + $0x2c] sm:$0xf] %v295
      %328 = vst [vmem:[%s172 + $0x30] sm:$0xf] %v296
      %329 = vst [vmem:[%s172 + $0x34] sm:$0xf] %v297
      %330 = vst [vmem:[%s172 + $0x38] sm:$0xf] %v298
      %331 = vst [vmem:[%s172 + $0x3c] sm:$0xf] %v299
      %s332 = smul.u32 16, %s14
      %p333 = scmp.lt.s32.totalorder %s332, 63
      %s334 = scalar_select %p333, %s332, 63
      %s335 = smul.addr %s334, 4
      %s336 = scalar_lea.vmem %s3, %s335
      // Predicated region
      $region33: #{masked_basic_block.6} parent=31 // pred_check
        %p337 = pneg %p100
      $region34: #{masked_basic_block.6} parent=31 // pred_check_branch
        %339 = sbr.rel (%p337) target = $region36
      $region35: #{masked_basic_block.6} parent=31 // pred_region
        %s340 = smul.u32 16, %s14
      $region36: #{masked_basic_block.6} parent=31 // pred_fallthru
        _
    $region32: #{masked_basic_block.6} parent=5 // pred_fallthru
      _
    %p341 = scmp.le.s32.totalorder 2, %s9
    // Predicated region
    $region37: #{masked_basic_block.6} parent=5 // pred_check
      %p342 = pneg %p341
    $region38: #{masked_basic_block.6} parent=5 // pred_check_branch
      %344 = sbr.rel (%p342) target = $region40
    $region39: #{masked_basic_block.6} parent=5 // pred_region
      %s345 = ssub.s32 %s9, 2
      // Predicated region
      $region41: #{masked_basic_block.6} parent=39 // pred_check
        %p346 = pneg %p106
      $region42: #{masked_basic_block.6} parent=39 // pred_check_branch
        %348 = sbr.rel (%p346) target = $region44
      $region43: #{masked_basic_block.6} parent=39 // pred_region
        %s349 = smul.u32 16, %s15
        %p350 = scmp.lt.s32.totalorder %s349, 63
        %s351 = scalar_select %p350, %s349, 63
        %s352 = smul.addr %s351, 4
        %s353 = scalar_lea.vmem %s3, %s352
      $region44: #{masked_basic_block.6} parent=39 // pred_fallthru
        _
    $region40: #{masked_basic_block.6} parent=5 // pred_fallthru
      _
  $region6: #{masked_basic_block.6} parent=0 // loop_footer
    %s13 = sadd.s32 1, %s9
  $region7: #{masked_basic_block.6} parent=0 // loop_footer_branch
    %8 = sbr.rel target = $region3
  $region8: #{masked_basic_block.6} parent=0 // loop_exit
    _

// kernel: masked_basic_block.5
$region0: #{masked_basic_block.5}
  #allocation0 [shape = 'u32[]', space=smem, size = 0x4, offset = 0x4, fixed_abs, tag = 'smem constant byte address 0x4 - core index']
  #allocation1 [shape = 'u32[144,128]{1,0:T(1,128)}', space=vmem, size = 0x12000, scoped, tag = 'internal scratch']
  %s0 = inlined_call_operand.vmem [shape: bf16[512,36], index: 0, kind: input, shape index: {}]
  %s1 = inlined_call_operand.vmem [shape: bf16[36,128], index: 1, kind: input, shape index: {}]
  %s2 = inlined_call_operand.vmem [shape: f32[512,128], index: 2, kind: output, shape index: {0}]
  %s3 = inlined_call_operand.vmem [shape: f32[1,128], index: 3, kind: output, shape index: {1}]
  %s4 = inlined_call_operand.vmem [shape: f32[1,128], index: 4, kind: output, shape index: {2}]
  %5 = xla_tuple %s2, %s3, %s4
  %s6 = sld [smem:[#allocation0]]
  $region61: #{masked_basic_block.5} parent=0
    _
  %s8 = ssub.s32 1, %s6
  %s9 = scalar_select 0, %s8, %s6
  loop: start=0, step=1, limit=6
  $region2: #{masked_basic_block.5} parent=0 // loop_pre_header
    _
  $region3: #{masked_basic_block.5} parent=0 // loop_header
    %s11 = sphi 0, %s15
    %p12 = scmp.ge.s32.totalorder %s11, 6
    %s21 = sphi 0, %s23
    %s24 = sphi 0, %s21
    %s25 = sphi 0, %s24
    %s41 = sphi 0, %s25
    %s45 = sphi 0, %s45
    %s47 = sphi 0, %s45
    %s48 = sphi 0, %s47
    %s62 = sphi 0, %s48
    %s68 = sphi 0, %s70
    %s71 = sphi 0, %s68
    %s72 = sphi 0, %s71
    %s88 = sphi 0, %s72
    %s92 = sphi 0, %s92
    %s94 = sphi 0, %s92
    %s95 = sphi 0, %s94
    %s109 = sphi 0, %s95
    %s113 = sphi 0, %s113
    %s115 = sphi 0, %s113
    %s116 = sphi 0, %s115
    %s130 = sphi 0, %s116
  $region4: #{masked_basic_block.5} parent=0 // loop_header_branch
    %14 = sbr.rel (%p12) target = $region8
  $region5: #{masked_basic_block.5} parent=0 // loop_body
    %s16 = ssub.s32 %s11, 1
    %s17 = ssub.s32 %s11, 2
    %s18 = sadd.s32 %s11, 1
    %s19 = ssub.s32 %s11, %s18
    %p20 = scmp.eq.s32.totalorder %s19, 0
    %s22 = sadd.s32 %s21, 1
    %s23 = scalar_select %p20, %s21, %s22
    %p26 = pneg %p20
    %p27 = scmp.eq.s32.totalorder %s11, 3
    %p28 = por %p26, %p27
    %p29 = scmp.ne.s32.totalorder %s21, %s24
    %p30 = scmp.eq.s32.totalorder %s11, 0
    %p31 = por %p29, %p30
    %p32 = scmp.ne.s32.totalorder %s21, %s24
    %p33 = scmp.eq.s32.totalorder %s16, 3
    %p34 = por %p32, %p33
    %p35 = scmp.ne.s32.totalorder %s24, %s25
    %p36 = scmp.eq.s32.totalorder %s16, 0
    %p37 = por %p35, %p36
    %p38 = scmp.ne.s32.totalorder %s24, %s25
    %p39 = scmp.eq.s32.totalorder %s17, 3
    %p40 = por %p38, %p39
    %p42 = scmp.ne.s32.totalorder %s25, %s41
    %p43 = scmp.eq.s32.totalorder %s17, 0
    %p44 = por %p42, %p43
    %s46 = sadd.s32 %s45, 1
    %p49 = scmp.eq.s32.totalorder %s11, 3
    %p50 = scmp.ne.s32.totalorder %s45, %s47
    %p51 = scmp.eq.s32.totalorder %s11, 0
    %p52 = por %p50, %p51
    %p53 = scmp.ne.s32.totalorder %s45, %s47
    %p54 = scmp.eq.s32.totalorder %s16, 3
    %p55 = por %p53, %p54
    %p56 = scmp.ne.s32.totalorder %s47, %s48
    %p57 = scmp.eq.s32.totalorder %s16, 0
    %p58 = por %p56, %p57
    %p59 = scmp.ne.s32.totalorder %s47, %s48
    %p60 = scmp.eq.s32.totalorder %s17, 3
    %p61 = por %p59, %p60
    %p63 = scmp.ne.s32.totalorder %s48, %s62
    %p64 = scmp.eq.s32.totalorder %s17, 0
    %p65 = por %p63, %p64
    %s66 = ssub.s32 %s11, %s18
    %p67 = scmp.eq.s32.totalorder %s66, 0
    %s69 = sadd.s32 %s68, 1
    %s70 = scalar_select %p67, %s68, %s69
    %p73 = pneg %p67
    %p74 = scmp.eq.s32.totalorder %s11, 3
    %p75 = por %p73, %p74
    %p76 = scmp.ne.s32.totalorder %s68, %s71
    %p77 = scmp.eq.s32.totalorder %s11, 0
    %p78 = por %p76, %p77
    %p79 = scmp.ne.s32.totalorder %s68, %s71
    %p80 = scmp.eq.s32.totalorder %s16, 3
    %p81 = por %p79, %p80
    %p82 = scmp.ne.s32.totalorder %s71, %s72
    %p83 = scmp.eq.s32.totalorder %s16, 0
    %p84 = por %p82, %p83
    %p85 = scmp.ne.s32.totalorder %s71, %s72
    %p86 = scmp.eq.s32.totalorder %s17, 3
    %p87 = por %p85, %p86
    %p89 = scmp.ne.s32.totalorder %s72, %s88
    %p90 = scmp.eq.s32.totalorder %s17, 0
    %p91 = por %p89, %p90
    %s93 = sadd.s32 %s92, 1
    %p96 = scmp.eq.s32.totalorder %s11, 3
    %p97 = scmp.ne.s32.totalorder %s92, %s94
    %p98 = scmp.eq.s32.totalorder %s11, 0
    %p99 = por %p97, %p98
    %p100 = scmp.ne.s32.totalorder %s92, %s94
    %p101 = scmp.eq.s32.totalorder %s16, 3
    %p102 = por %p100, %p101
    %p103 = scmp.ne.s32.totalorder %s94, %s95
    %p104 = scmp.eq.s32.totalorder %s16, 0
    %p105 = por %p103, %p104
    %p106 = scmp.ne.s32.totalorder %s94, %s95
    %p107 = scmp.eq.s32.totalorder %s17, 3
    %p108 = por %p106, %p107
    %p110 = scmp.ne.s32.totalorder %s95, %s109
    %p111 = scmp.eq.s32.totalorder %s17, 0
    %p112 = por %p110, %p111
    %s114 = sadd.s32 %s113, 1
    %p117 = scmp.eq.s32.totalorder %s11, 3
    %p118 = scmp.ne.s32.totalorder %s113, %s115
    %p119 = scmp.eq.s32.totalorder %s11, 0
    %p120 = por %p118, %p119
    %p121 = scmp.ne.s32.totalorder %s113, %s115
    %p122 = scmp.eq.s32.totalorder %s16, 3
    %p123 = por %p121, %p122
    %p124 = scmp.ne.s32.totalorder %s115, %s116
    %p125 = scmp.eq.s32.totalorder %s16, 0
    %p126 = por %p124, %p125
    %p127 = scmp.ne.s32.totalorder %s115, %s116
    %p128 = scmp.eq.s32.totalorder %s17, 3
    %p129 = por %p127, %p128
    %p131 = scmp.ne.s32.totalorder %s116, %s130
    %p132 = scmp.eq.s32.totalorder %s17, 0
    %p133 = por %p131, %p132
    %p134 = scmp.le.s32.totalorder 1, %s11
    %p135 = scmp.lt.s32.totalorder %s11, 5
    %p136 = pnand %p134, %p135
    %p137 = pneg %p136
    // Predicated region
    $region9: #{masked_basic_block.5} parent=5 // pred_check
      _
    $region10: #{masked_basic_block.5} parent=5 // pred_check_branch
      %139 = sbr.rel (%p136) target = $region12
    $region11: #{masked_basic_block.5} parent=5 // pred_region
      %s140 = ssub.s32 %s11, 1
      // Predicated region
      $region13: #{masked_basic_block.5} parent=11 // pred_check
        %p141 = pneg %p58
      $region14: #{masked_basic_block.5} parent=11 // pred_check_branch
        %143 = sbr.rel (%p141) target = $region16
      $region15: #{masked_basic_block.5} parent=11 // pred_region
        _
      $region16: #{masked_basic_block.5} parent=11 // pred_fallthru
        _
    $region12: #{masked_basic_block.5} parent=5 // pred_fallthru
      _
    %p144 = scmp.lt.s32.totalorder %s11, 4
    // Predicated region
    $region17: #{masked_basic_block.5} parent=5 // pred_check
      %p145 = pneg %p144
    $region18: #{masked_basic_block.5} parent=5 // pred_check_branch
      %147 = sbr.rel (%p145) target = $region20
    $region19: #{masked_basic_block.5} parent=5 // pred_region
      // Predicated region
      $region21: #{masked_basic_block.5} parent=19 // pred_check
        %p148 = pneg %p31
      $region22: #{masked_basic_block.5} parent=19 // pred_check_branch
        %150 = sbr.rel (%p148) target = $region24
      $region23: #{masked_basic_block.5} parent=19 // pred_region
        %s151 = smul.u32 16, %s11
        %p152 = scmp.lt.s32.totalorder %s151, 63
        %s153 = scalar_select %p152, %s151, 63
        %s154 = smul.addr %s153, 4
        %s155 = scalar_lea.vmem %s0, %s154
        %s156 = smul.u32 16, %s11
      $region24: #{masked_basic_block.5} parent=19 // pred_fallthru
        _
    $region20: #{masked_basic_block.5} parent=5 // pred_fallthru
      _
    %p157 = scmp.le.s32.totalorder 1, %s11
    %p158 = scmp.lt.s32.totalorder %s11, 5
    %p159 = pnand %p157, %p158
    %p160 = pneg %p159
    // Predicated region
    $region25: #{masked_basic_block.5} parent=5 // pred_check
      _
    $region26: #{masked_basic_block.5} parent=5 // pred_check_branch
      %162 = sbr.rel (%p159) target = $region28
    $region27: #{masked_basic_block.5} parent=5 // pred_region
      %s163 = ssub.s32 %s11, 1
      %s164 = smul.u32 16, %s16
      %p165 = scmp.lt.s32.totalorder %s164, 63
      %s166 = scalar_select %p165, %s164, 63
      %s167 = smul.addr %s166, 4
      %s168 = scalar_lea.vmem %s0, %s167
      %p169 = pneg %p37
      %p170 = pneg %p34
      %p171 = pneg %p58
      %p172 = pneg %p55
      %p173 = pneg %p84
      %p174 = pneg %p81
      %s175 = smul.u32 16, %s16
      %p176 = scmp.lt.s32.totalorder %s175, 63
      %s177 = scalar_select %p176, %s175, 63
      %s178 = smul.addr %s177, 8
      %s179 = scalar_lea.vmem %s2, %s178
      %p180 = pneg %p105
      %p181 = pneg %p102
      %p182 = pneg %p126
      %p183 = pneg %p123
      %s184 = smul.u32 16, %s16
      %p185 = scmp.lt.s32.totalorder %s184, 63
      %s186 = scalar_select %p185, %s184, 63
      %s187 = smul.addr %s186, 4
      %s188 = scalar_lea.vmem %s0, %s187
      %s189 = smul.u32 16, %s16
      %s190 = smul.u32 16, %s16
      %p191 = scmp.lt.s32.totalorder %s190, 63
      %s192 = scalar_select %p191, %s190, 63
      %s193 = smul.addr %s192, 8
      %s194 = scalar_lea.vmem %s2, %s193
      %s195 = smul.u32 16, %s16
      %v197 = vld [vmem:[%s188] sm:$0xf]
      %v198 = vld [vmem:[%s188 + $0x4] sm:$0xf]
      %v199 = vld [vmem:[%s188 + $0x8] sm:$0xf]
      %v200 = vld [vmem:[%s188 + $0xc] sm:$0xf]
      %v201 = vld [vmem:[%s188 + $0x10] sm:$0xf]
      %v202 = vld [vmem:[%s188 + $0x14] sm:$0xf]
      %v203 = vld [vmem:[%s188 + $0x18] sm:$0xf]
      %v204 = vld [vmem:[%s188 + $0x1c] sm:$0xf]
      %v205 = vld [vmem:[%s188 + $0x20] sm:$0xf]
      %v206 = vld [vmem:[%s188 + $0x24] sm:$0xf]
      %v207 = vld [vmem:[%s188 + $0x28] sm:$0xf]
      %v208 = vld [vmem:[%s188 + $0x2c] sm:$0xf]
      %v209 = vld [vmem:[%s188 + $0x30] sm:$0xf]
      %v210 = vld [vmem:[%s188 + $0x34] sm:$0xf]
      %v211 = vld [vmem:[%s188 + $0x38] sm:$0xf]
      %v212 = vld [vmem:[%s188 + $0x3c] sm:$0xf]
      %v213 = vld [vmem:[%s1] sm:$0xf]
      %v214 = vld [vmem:[%s1 + $0x4] sm:$0xf]
      %v215 = vld [vmem:[%s1 + $0x8] sm:$0xf]
      %v216 = vld [vmem:[%s1 + $0xc] sm:$0xf]
      %v217 = vld [vmem:[%s1 + $0x10] sm:$0x3]
      %v234 = vunpack.c.l.b16 %v197
      %v235 = vunpack.c.l.b16 %v198
      %v236 = vunpack.c.l.b16 %v199
      %v237 = vunpack.c.l.b16 %v200
      %v238 = vunpack.c.l.b16 %v201
      %v239 = vunpack.c.l.b16 %v202
      %v240 = vunpack.c.l.b16 %v203
      %v241 = vunpack.c.l.b16 %v204
      %v242 = vunpack.c.l.b16 %v205
      %v243 = vunpack.c.l.b16 %v206
      %v244 = vunpack.c.l.b16 %v207
      %v245 = vunpack.c.l.b16 %v208
      %v246 = vunpack.c.l.b16 %v209
      %v247 = vunpack.c.l.b16 %v210
      %v248 = vunpack.c.l.b16 %v211
      %v249 = vunpack.c.l.b16 %v212
      %v250 = vpack.c.b16 %v235, %v234
      %v251 = vpack.c.b16 %v237, %v236
      %v252 = vpack.c.b16 %v239, %v238
      %v253 = vpack.c.b16 %v241, %v240
      %v254 = vpack.c.b16 %v243, %v242
      %v255 = vpack.c.b16 %v245, %v244
      %v256 = vpack.c.b16 %v247, %v246
      %v257 = vpack.c.b16 %v249, %v248
      %v263 = vunpack.c.l.b16 %v213
      %v264 = vunpack.c.l.b16 %v214
      %v265 = vunpack.c.l.b16 %v215
      %v266 = vunpack.c.l.b16 %v216
      %v267 = vunpack.c.l.b16 %v217
      %v268 = vpack.c.b16 %v264, %v263
      %v269 = vpack.c.b16 %v266, %v265
      %v270 = vpack.c.b16 %v267, %v267
      %vm273 = vcmask 293888
      %v275 = vsel %vm273, %v250, 0
      %v278 = vsel %vm273, %v251, 0
      %v281 = vsel %vm273, %v252, 0
      %v284 = vsel %vm273, %v253, 0
      %v287 = vsel %vm273, %v254, 0
      %v290 = vsel %vm273, %v255, 0
      %v293 = vsel %vm273, %v256, 0
      %v296 = vsel %vm273, %v257, 0
      %vm298 = vcmask 1041408
      %v300 = vsel %vm298, %v270, 0
      %302 = vmatprep.subr.bf16.mxu0 0
      %303 = vmatpush1.bf16.msra.mxu0 0
      %304 = vmatprep.subr.bf16.mxu0 0
      %305 = vmatpush1.bf16.msra.mxu0 0
      %306 = vmatprep.subr.bf16.mxu0 0
      %307 = vmatpush1.bf16.msra.mxu0 0
      %308 = vmatprep.subr.bf16.mxu0 0
      %309 = vmatpush1.bf16.msra.mxu0 0
      %310 = vmatprep.subr.bf16.mxu0 0
      %311 = vmatpush1.bf16.msra.mxu0 0
      %312 = vmatprep.subr.bf16.mxu0 0
      %313 = vmatpush1.bf16.msra.mxu0 %v300
      %314 = vmatprep.subr.bf16.mxu0 0
      %315 = vmatpush1.bf16.msra.mxu0 %v269
      %316 = vmatprep.subr.bf16.mxu0 0
      %317 = vmatpush1.bf16.msra.mxu0 %v268
      %318 = vmatprep.subr.bf16.mxu0 0
      %319 = vmatpush2.bf16.msra.mxu0 0
      %320 = vmatprep.subr.bf16.mxu0 0
      %321 = vmatpush2.bf16.msra.mxu0 0
      %322 = vmatprep.subr.bf16.mxu0 0
      %323 = vmatpush2.bf16.msra.mxu0 0
      %324 = vmatprep.subr.bf16.mxu0 0
      %325 = vmatpush2.bf16.msra.mxu0 0
      %326 = vmatprep.subr.bf16.mxu0 0
      %327 = vmatpush2.bf16.msra.mxu0 0
      %328 = vmatprep.subr.bf16.mxu0 0
      %329 = vmatpush2.bf16.msra.mxu0 0
      %330 = vmatprep.subr.bf16.mxu0 0
      %331 = vmatpush2.bf16.msra.mxu0 0
      %332 = vmatprep.subr.bf16.mxu0 0
      %333 = vmatpush2.bf16.msra.mxu0 0
      %334 = vmatprep.mubr.bf16.mxu0 0
      %335 = vmatmul.mubr.bf16.gmra.mxu0 %v275
      %v336 = vpop.f32.mrf.mxu0
      %v337 = vadd.f32 0.0, %v336
      %v338 = vpop.f32.mrf.mxu0
      %v339 = vpop.f32.mrf.mxu0
      %v340 = vadd.f32 0.0, %v339
      %v341 = vpop.f32.mrf.mxu0
      %342 = vmatprep.mubr.bf16.mxu0 0
      %343 = vmatmul.mubr.bf16.gmra.mxu0 %v278
      %v344 = vpop.f32.mrf.mxu0
      %v345 = vadd.f32 0.0, %v344
      %v346 = vpop.f32.mrf.mxu0
      %v347 = vpop.f32.mrf.mxu0
      %v348 = vadd.f32 0.0, %v347
      %v349 = vpop.f32.mrf.mxu0
      %350 = vmatprep.mubr.bf16.mxu0 0
      %351 = vmatmul.mubr.bf16.gmra.mxu0 %v281
      %v352 = vpop.f32.mrf.mxu0
      %v353 = vadd.f32 0.0, %v352
      %v354 = vpop.f32.mrf.mxu0
      %v355 = vpop.f32.mrf.mxu0
      %v356 = vadd.f32 0.0, %v355
      %v357 = vpop.f32.mrf.mxu0
      %358 = vmatprep.mubr.bf16.mxu0 0
      %359 = vmatmul.mubr.bf16.gmra.mxu0 %v284
      %v360 = vpop.f32.mrf.mxu0
      %v361 = vadd.f32 0.0, %v360
      %v362 = vpop.f32.mrf.mxu0
      %v363 = vpop.f32.mrf.mxu0
      %v364 = vadd.f32 0.0, %v363
      %v365 = vpop.f32.mrf.mxu0
      %366 = vmatprep.mubr.bf16.mxu0 0
      %367 = vmatmul.mubr.bf16.gmra.mxu0 %v287
      %v368 = vpop.f32.mrf.mxu0
      %v369 = vadd.f32 0.0, %v368
      %v370 = vpop.f32.mrf.mxu0
      %v371 = vpop.f32.mrf.mxu0
      %v372 = vadd.f32 0.0, %v371
      %v373 = vpop.f32.mrf.mxu0
      %374 = vmatprep.mubr.bf16.mxu0 0
      %375 = vmatmul.mubr.bf16.gmra.mxu0 %v290
      %v376 = vpop.f32.mrf.mxu0
      %v377 = vadd.f32 0.0, %v376
      %v378 = vpop.f32.mrf.mxu0
      %v379 = vpop.f32.mrf.mxu0
      %v380 = vadd.f32 0.0, %v379
      %v381 = vpop.f32.mrf.mxu0
      %382 = vmatprep.mubr.bf16.mxu0 0
      %383 = vmatmul.mubr.bf16.gmra.mxu0 %v293
      %v384 = vpop.f32.mrf.mxu0
      %v385 = vadd.f32 0.0, %v384
      %v386 = vpop.f32.mrf.mxu0
      %v387 = vpop.f32.mrf.mxu0
      %v388 = vadd.f32 0.0, %v387
      %v389 = vpop.f32.mrf.mxu0
      %390 = vmatprep.mubr.bf16.mxu0 0
      %391 = vmatmul.mubr.bf16.gmra.mxu0 %v296
      %v392 = vpop.f32.mrf.mxu0
      %v393 = vadd.f32 0.0, %v392
      %v394 = vpop.f32.mrf.mxu0
      %v395 = vpop.f32.mrf.mxu0
      %v396 = vadd.f32 0.0, %v395
      %v397 = vpop.f32.mrf.mxu0
      %398 = vdwg.mxu0
      %399 = vst [vmem:[%s194] sm:$0xff] %v337
      %400 = vst [vmem:[%s194 + $0x8] sm:$0xff] %v340
      %401 = vst [vmem:[%s194 + $0x10] sm:$0xff] %v345
      %402 = vst [vmem:[%s194 + $0x18] sm:$0xff] %v348
      %403 = vst [vmem:[%s194 + $0x20] sm:$0xff] %v353
      %404 = vst [vmem:[%s194 + $0x28] sm:$0xff] %v356
      %405 = vst [vmem:[%s194 + $0x30] sm:$0xff] %v361
      %406 = vst [vmem:[%s194 + $0x38] sm:$0xff] %v364
      %407 = vst [vmem:[%s194 + $0x40] sm:$0xff] %v369
      %408 = vst [vmem:[%s194 + $0x48] sm:$0xff] %v372
      %409 = vst [vmem:[%s194 + $0x50] sm:$0xff] %v377
      %410 = vst [vmem:[%s194 + $0x58] sm:$0xff] %v380
      %411 = vst [vmem:[%s194 + $0x60] sm:$0xff] %v385
      %412 = vst [vmem:[%s194 + $0x68] sm:$0xff] %v388
      %413 = vst [vmem:[%s194 + $0x70] sm:$0xff] %v393
      %414 = vst [vmem:[%s194 + $0x78] sm:$0xff] %v396
      %p415 = scmp.eq.s32.totalorder %s16, 0
      // Predicated region
      $region29: #{masked_basic_block.5} parent=27 // pred_check
        %p416 = pneg %p415
      $region30: #{masked_basic_block.5} parent=27 // pred_check_branch
        %418 = sbr.rel (%p416) target = $region32
      $region31: #{masked_basic_block.5} parent=27 // pred_region
        %419 = vst [vmem:[%s3] sm:$0x1] 0.0
        %420 = vst [vmem:[%s4] sm:$0x1] 0.0
      $region32: #{masked_basic_block.5} parent=27 // pred_fallthru
        _
      %v421 = vld [vmem:[%s3] sm:$0x1]
      %v422 = vadd.f32 %v337, %v340
      %v423 = vadd.f32 %v422, %v345
      %v424 = vadd.f32 %v423, %v348
      %v425 = vadd.f32 %v424, %v353
      %v426 = vadd.f32 %v425, %v356
      %v427 = vadd.f32 %v426, %v361
      %v428 = vadd.f32 %v427, %v364
      %v429 = vadd.f32 %v428, %v369
      %v430 = vadd.f32 %v429, %v372
      %v431 = vadd.f32 %v430, %v377
      %v432 = vadd.f32 %v431, %v380
      %v433 = vadd.f32 %v432, %v385
      %v434 = vadd.f32 %v433, %v388
      %v435 = vadd.f32 %v434, %v393
      %v436 = vadd.f32 %v435, %v396
      %v437 = vrot.slane %v436, 4
      %v438 = vadd.f32 %v436, %v437
      %v439 = vrot.slane %v438, 2
      %v440 = vadd.f32 %v438, %v439
      %v441 = vrot.slane %v440, 1
      %v442 = vadd.f32 %v440, %v441
      %v443 = vadd.f32 %v421, %v442
      %444 = vst [vmem:[%s3] sm:$0x1] %v443
      %v445 = vld [vmem:[%s4] sm:$0x1]
      %v446 = vmul.f32 %v337, %v337
      %v447 = vmul.f32 %v340, %v340
      %v448 = vmul.f32 %v345, %v345
      %v449 = vmul.f32 %v348, %v348
      %v450 = vmul.f32 %v353, %v353
      %v451 = vmul.f32 %v356, %v356
      %v452 = vmul.f32 %v361, %v361
      %v453 = vmul.f32 %v364, %v364
      %v454 = vmul.f32 %v369, %v369
      %v455 = vmul.f32 %v372, %v372
      %v456 = vmul.f32 %v377, %v377
      %v457 = vmul.f32 %v380, %v380
      %v458 = vmul.f32 %v385, %v385
      %v459 = vmul.f32 %v388, %v388
      %v460 = vmul.f32 %v393, %v393
      %v461 = vmul.f32 %v396, %v396
      %v462 = vadd.f32 %v446, %v447
      %v463 = vadd.f32 %v462, %v448
      %v464 = vadd.f32 %v463, %v449
      %v465 = vadd.f32 %v464, %v450
      %v466 = vadd.f32 %v465, %v451
      %v467 = vadd.f32 %v466, %v452
      %v468 = vadd.f32 %v467, %v453
      %v469 = vadd.f32 %v468, %v454
      %v470 = vadd.f32 %v469, %v455
      %v471 = vadd.f32 %v470, %v456
      %v472 = vadd.f32 %v471, %v457
      %v473 = vadd.f32 %v472, %v458
      %v474 = vadd.f32 %v473, %v459
      %v475 = vadd.f32 %v474, %v460
      %v476 = vadd.f32 %v475, %v461
      %v477 = vrot.slane %v476, 4
      %v478 = vadd.f32 %v476, %v477
      %v479 = vrot.slane %v478, 2
      %v480 = vadd.f32 %v478, %v479
      %v481 = vrot.slane %v480, 1
      %v482 = vadd.f32 %v480, %v481
      %v483 = vadd.f32 %v445, %v482
      %484 = vst [vmem:[%s4] sm:$0x1] %v483
      %s485 = smul.u32 16, %s16
      %p486 = scmp.lt.s32.totalorder %s485, 63
      %s487 = scalar_select %p486, %s485, 63
      %s488 = smul.addr %s487, 8
      %s489 = scalar_lea.vmem %s2, %s488
      // Predicated region
      $region33: #{masked_basic_block.5} parent=27 // pred_check
        %p490 = pneg %p81
      $region34: #{masked_basic_block.5} parent=27 // pred_check_branch
        %492 = sbr.rel (%p490) target = $region36
      $region35: #{masked_basic_block.5} parent=27 // pred_region
        %s493 = smul.u32 16, %s16
      $region36: #{masked_basic_block.5} parent=27 // pred_fallthru
        _
      // Predicated region
      $region37: #{masked_basic_block.5} parent=27 // pred_check
        %p494 = pneg %p102
      $region38: #{masked_basic_block.5} parent=27 // pred_check_branch
        %496 = sbr.rel (%p494) target = $region40
      $region39: #{masked_basic_block.5} parent=27 // pred_region
        _
      $region40: #{masked_basic_block.5} parent=27 // pred_fallthru
        _
      // Predicated region
      $region41: #{masked_basic_block.5} parent=27 // pred_check
        %p497 = pneg %p123
      $region42: #{masked_basic_block.5} parent=27 // pred_check_branch
        %499 = sbr.rel (%p497) target = $region44
      $region43: #{masked_basic_block.5} parent=27 // pred_region
        _
      $region44: #{masked_basic_block.5} parent=27 // pred_fallthru
        _
      // Predicated region
      $region45: #{masked_basic_block.5} parent=27 // pred_check
        %p500 = pneg %p102
      $region46: #{masked_basic_block.5} parent=27 // pred_check_branch
        %502 = sbr.rel (%p500) target = $region48
      $region47: #{masked_basic_block.5} parent=27 // pred_region
        _
      $region48: #{masked_basic_block.5} parent=27 // pred_fallthru
        _
      // Predicated region
      $region49: #{masked_basic_block.5} parent=27 // pred_check
        %p503 = pneg %p123
      $region50: #{masked_basic_block.5} parent=27 // pred_check_branch
        %505 = sbr.rel (%p503) target = $region52
      $region51: #{masked_basic_block.5} parent=27 // pred_region
        _
      $region52: #{masked_basic_block.5} parent=27 // pred_fallthru
        _
    $region28: #{masked_basic_block.5} parent=5 // pred_fallthru
      _
    %p506 = scmp.le.s32.totalorder 2, %s11
    // Predicated region
    $region53: #{masked_basic_block.5} parent=5 // pred_check
      %p507 = pneg %p506
    $region54: #{masked_basic_block.5} parent=5 // pred_check_branch
      %509 = sbr.rel (%p507) target = $region56
    $region55: #{masked_basic_block.5} parent=5 // pred_region
      %s510 = ssub.s32 %s11, 2
      // Predicated region
      $region57: #{masked_basic_block.5} parent=55 // pred_check
        %p511 = pneg %p87
      $region58: #{masked_basic_block.5} parent=55 // pred_check_branch
        %513 = sbr.rel (%p511) target = $region60
      $region59: #{masked_basic_block.5} parent=55 // pred_region
        %s514 = smul.u32 16, %s17
        %p515 = scmp.lt.s32.totalorder %s514, 63
        %s516 = scalar_select %p515, %s514, 63
        %s517 = smul.addr %s516, 8
        %s518 = scalar_lea.vmem %s2, %s517
      $region60: #{masked_basic_block.5} parent=55 // pred_fallthru
        _
    $region56: #{masked_basic_block.5} parent=5 // pred_fallthru
      _
  $region6: #{masked_basic_block.5} parent=0 // loop_footer
    %s15 = sadd.s32 1, %s11
  $region7: #{masked_basic_block.5} parent=0 // loop_footer_branch
    %10 = sbr.rel target = $region3
  $region8: #{masked_basic_block.5} parent=0 // loop_exit
    _

// kernel: masked_basic_block.8
$region0: #{masked_basic_block.8}
  #allocation0 [shape = 'u32[]', space=smem, size = 0x4, offset = 0x4, fixed_abs, tag = 'smem constant byte address 0x4 - core index']
  #allocation1 [shape = 'u32[144,128]{1,0:T(1,128)}', space=vmem, size = 0x12000, scoped, tag = 'internal scratch']
  %s0 = inlined_call_operand.vmem [shape: bf16[512,72], index: 0, kind: input, shape index: {}]
  %s1 = inlined_call_operand.vmem [shape: bf16[72,128], index: 1, kind: input, shape index: {}]
  %s2 = inlined_call_operand.vmem [shape: f32[512,128], index: 2, kind: output, shape index: {0}]
  %s3 = inlined_call_operand.vmem [shape: f32[1,128], index: 3, kind: output, shape index: {1}]
  %s4 = inlined_call_operand.vmem [shape: f32[1,128], index: 4, kind: output, shape index: {2}]
  %5 = xla_tuple %s2, %s3, %s4
  %s6 = sld [smem:[#allocation0]]
  $region61: #{masked_basic_block.8} parent=0
    _
  %s8 = ssub.s32 1, %s6
  %s9 = scalar_select 0, %s8, %s6
  loop: start=0, step=1, limit=6
  $region2: #{masked_basic_block.8} parent=0 // loop_pre_header
    _
  $region3: #{masked_basic_block.8} parent=0 // loop_header
    %s11 = sphi 0, %s15
    %p12 = scmp.ge.s32.totalorder %s11, 6
    %s21 = sphi 0, %s23
    %s24 = sphi 0, %s21
    %s25 = sphi 0, %s24
    %s41 = sphi 0, %s25
    %s45 = sphi 0, %s45
    %s47 = sphi 0, %s45
    %s48 = sphi 0, %s47
    %s62 = sphi 0, %s48
    %s68 = sphi 0, %s70
    %s71 = sphi 0, %s68
    %s72 = sphi 0, %s71
    %s88 = sphi 0, %s72
    %s92 = sphi 0, %s92
    %s94 = sphi 0, %s92
    %s95 = sphi 0, %s94
    %s109 = sphi 0, %s95
    %s113 = sphi 0, %s113
    %s115 = sphi 0, %s113
    %s116 = sphi 0, %s115
    %s130 = sphi 0, %s116
  $region4: #{masked_basic_block.8} parent=0 // loop_header_branch
    %14 = sbr.rel (%p12) target = $region8
  $region5: #{masked_basic_block.8} parent=0 // loop_body
    %s16 = ssub.s32 %s11, 1
    %s17 = ssub.s32 %s11, 2
    %s18 = sadd.s32 %s11, 1
    %s19 = ssub.s32 %s11, %s18
    %p20 = scmp.eq.s32.totalorder %s19, 0
    %s22 = sadd.s32 %s21, 1
    %s23 = scalar_select %p20, %s21, %s22
    %p26 = pneg %p20
    %p27 = scmp.eq.s32.totalorder %s11, 3
    %p28 = por %p26, %p27
    %p29 = scmp.ne.s32.totalorder %s21, %s24
    %p30 = scmp.eq.s32.totalorder %s11, 0
    %p31 = por %p29, %p30
    %p32 = scmp.ne.s32.totalorder %s21, %s24
    %p33 = scmp.eq.s32.totalorder %s16, 3
    %p34 = por %p32, %p33
    %p35 = scmp.ne.s32.totalorder %s24, %s25
    %p36 = scmp.eq.s32.totalorder %s16, 0
    %p37 = por %p35, %p36
    %p38 = scmp.ne.s32.totalorder %s24, %s25
    %p39 = scmp.eq.s32.totalorder %s17, 3
    %p40 = por %p38, %p39
    %p42 = scmp.ne.s32.totalorder %s25, %s41
    %p43 = scmp.eq.s32.totalorder %s17, 0
    %p44 = por %p42, %p43
    %s46 = sadd.s32 %s45, 1
    %p49 = scmp.eq.s32.totalorder %s11, 3
    %p50 = scmp.ne.s32.totalorder %s45, %s47
    %p51 = scmp.eq.s32.totalorder %s11, 0
    %p52 = por %p50, %p51
    %p53 = scmp.ne.s32.totalorder %s45, %s47
    %p54 = scmp.eq.s32.totalorder %s16, 3
    %p55 = por %p53, %p54
    %p56 = scmp.ne.s32.totalorder %s47, %s48
    %p57 = scmp.eq.s32.totalorder %s16, 0
    %p58 = por %p56, %p57
    %p59 = scmp.ne.s32.totalorder %s47, %s48
    %p60 = scmp.eq.s32.totalorder %s17, 3
    %p61 = por %p59, %p60
    %p63 = scmp.ne.s32.totalorder %s48, %s62
    %p64 = scmp.eq.s32.totalorder %s17, 0
    %p65 = por %p63, %p64
    %s66 = ssub.s32 %s11, %s18
    %p67 = scmp.eq.s32.totalorder %s66, 0
    %s69 = sadd.s32 %s68, 1
    %s70 = scalar_select %p67, %s68, %s69
    %p73 = pneg %p67
    %p74 = scmp.eq.s32.totalorder %s11, 3
    %p75 = por %p73, %p74
    %p76 = scmp.ne.s32.totalorder %s68, %s71
    %p77 = scmp.eq.s32.totalorder %s11, 0
    %p78 = por %p76, %p77
    %p79 = scmp.ne.s32.totalorder %s68, %s71
    %p80 = scmp.eq.s32.totalorder %s16, 3
    %p81 = por %p79, %p80
    %p82 = scmp.ne.s32.totalorder %s71, %s72
    %p83 = scmp.eq.s32.totalorder %s16, 0
    %p84 = por %p82, %p83
    %p85 = scmp.ne.s32.totalorder %s71, %s72
    %p86 = scmp.eq.s32.totalorder %s17, 3
    %p87 = por %p85, %p86
    %p89 = scmp.ne.s32.totalorder %s72, %s88
    %p90 = scmp.eq.s32.totalorder %s17, 0
    %p91 = por %p89, %p90
    %s93 = sadd.s32 %s92, 1
    %p96 = scmp.eq.s32.totalorder %s11, 3
    %p97 = scmp.ne.s32.totalorder %s92, %s94
    %p98 = scmp.eq.s32.totalorder %s11, 0
    %p99 = por %p97, %p98
    %p100 = scmp.ne.s32.totalorder %s92, %s94
    %p101 = scmp.eq.s32.totalorder %s16, 3
    %p102 = por %p100, %p101
    %p103 = scmp.ne.s32.totalorder %s94, %s95
    %p104 = scmp.eq.s32.totalorder %s16, 0
    %p105 = por %p103, %p104
    %p106 = scmp.ne.s32.totalorder %s94, %s95
    %p107 = scmp.eq.s32.totalorder %s17, 3
    %p108 = por %p106, %p107
    %p110 = scmp.ne.s32.totalorder %s95, %s109
    %p111 = scmp.eq.s32.totalorder %s17, 0
    %p112 = por %p110, %p111
    %s114 = sadd.s32 %s113, 1
    %p117 = scmp.eq.s32.totalorder %s11, 3
    %p118 = scmp.ne.s32.totalorder %s113, %s115
    %p119 = scmp.eq.s32.totalorder %s11, 0
    %p120 = por %p118, %p119
    %p121 = scmp.ne.s32.totalorder %s113, %s115
    %p122 = scmp.eq.s32.totalorder %s16, 3
    %p123 = por %p121, %p122
    %p124 = scmp.ne.s32.totalorder %s115, %s116
    %p125 = scmp.eq.s32.totalorder %s16, 0
    %p126 = por %p124, %p125
    %p127 = scmp.ne.s32.totalorder %s115, %s116
    %p128 = scmp.eq.s32.totalorder %s17, 3
    %p129 = por %p127, %p128
    %p131 = scmp.ne.s32.totalorder %s116, %s130
    %p132 = scmp.eq.s32.totalorder %s17, 0
    %p133 = por %p131, %p132
    %p134 = scmp.le.s32.totalorder 1, %s11
    %p135 = scmp.lt.s32.totalorder %s11, 5
    %p136 = pnand %p134, %p135
    %p137 = pneg %p136
    // Predicated region
    $region9: #{masked_basic_block.8} parent=5 // pred_check
      _
    $region10: #{masked_basic_block.8} parent=5 // pred_check_branch
      %139 = sbr.rel (%p136) target = $region12
    $region11: #{masked_basic_block.8} parent=5 // pred_region
      %s140 = ssub.s32 %s11, 1
      // Predicated region
      $region13: #{masked_basic_block.8} parent=11 // pred_check
        %p141 = pneg %p58
      $region14: #{masked_basic_block.8} parent=11 // pred_check_branch
        %143 = sbr.rel (%p141) target = $region16
      $region15: #{masked_basic_block.8} parent=11 // pred_region
        _
      $region16: #{masked_basic_block.8} parent=11 // pred_fallthru
        _
    $region12: #{masked_basic_block.8} parent=5 // pred_fallthru
      _
    %p144 = scmp.lt.s32.totalorder %s11, 4
    // Predicated region
    $region17: #{masked_basic_block.8} parent=5 // pred_check
      %p145 = pneg %p144
    $region18: #{masked_basic_block.8} parent=5 // pred_check_branch
      %147 = sbr.rel (%p145) target = $region20
    $region19: #{masked_basic_block.8} parent=5 // pred_region
      // Predicated region
      $region21: #{masked_basic_block.8} parent=19 // pred_check
        %p148 = pneg %p31
      $region22: #{masked_basic_block.8} parent=19 // pred_check_branch
        %150 = sbr.rel (%p148) target = $region24
      $region23: #{masked_basic_block.8} parent=19 // pred_region
        %s151 = smul.u32 16, %s11
        %p152 = scmp.lt.s32.totalorder %s151, 63
        %s153 = scalar_select %p152, %s151, 63
        %s154 = smul.addr %s153, 4
        %s155 = scalar_lea.vmem %s0, %s154
        %s156 = smul.u32 16, %s11
      $region24: #{masked_basic_block.8} parent=19 // pred_fallthru
        _
    $region20: #{masked_basic_block.8} parent=5 // pred_fallthru
      _
    %p157 = scmp.le.s32.totalorder 1, %s11
    %p158 = scmp.lt.s32.totalorder %s11, 5
    %p159 = pnand %p157, %p158
    %p160 = pneg %p159
    // Predicated region
    $region25: #{masked_basic_block.8} parent=5 // pred_check
      _
    $region26: #{masked_basic_block.8} parent=5 // pred_check_branch
      %162 = sbr.rel (%p159) target = $region28
    $region27: #{masked_basic_block.8} parent=5 // pred_region
      %s163 = ssub.s32 %s11, 1
      %s164 = smul.u32 16, %s16
      %p165 = scmp.lt.s32.totalorder %s164, 63
      %s166 = scalar_select %p165, %s164, 63
      %s167 = smul.addr %s166, 4
      %s168 = scalar_lea.vmem %s0, %s167
      %p169 = pneg %p37
      %p170 = pneg %p34
      %p171 = pneg %p58
      %p172 = pneg %p55
      %p173 = pneg %p84
      %p174 = pneg %p81
      %s175 = smul.u32 16, %s16
      %p176 = scmp.lt.s32.totalorder %s175, 63
      %s177 = scalar_select %p176, %s175, 63
      %s178 = smul.addr %s177, 8
      %s179 = scalar_lea.vmem %s2, %s178
      %p180 = pneg %p105
      %p181 = pneg %p102
      %p182 = pneg %p126
      %p183 = pneg %p123
      %s184 = smul.u32 16, %s16
      %p185 = scmp.lt.s32.totalorder %s184, 63
      %s186 = scalar_select %p185, %s184, 63
      %s187 = smul.addr %s186, 4
      %s188 = scalar_lea.vmem %s0, %s187
      %s189 = smul.u32 16, %s16
      %s190 = smul.u32 16, %s16
      %p191 = scmp.lt.s32.totalorder %s190, 63
      %s192 = scalar_select %p191, %s190, 63
      %s193 = smul.addr %s192, 8
      %s194 = scalar_lea.vmem %s2, %s193
      %s195 = smul.u32 16, %s16
      %v197 = vld [vmem:[%s188] sm:$0xf]
      %v198 = vld [vmem:[%s188 + $0x4] sm:$0xf]
      %v199 = vld [vmem:[%s188 + $0x8] sm:$0xf]
      %v200 = vld [vmem:[%s188 + $0xc] sm:$0xf]
      %v201 = vld [vmem:[%s188 + $0x10] sm:$0xf]
      %v202 = vld [vmem:[%s188 + $0x14] sm:$0xf]
      %v203 = vld [vmem:[%s188 + $0x18] sm:$0xf]
      %v204 = vld [vmem:[%s188 + $0x1c] sm:$0xf]
      %v205 = vld [vmem:[%s188 + $0x20] sm:$0xf]
      %v206 = vld [vmem:[%s188 + $0x24] sm:$0xf]
      %v207 = vld [vmem:[%s188 + $0x28] sm:$0xf]
      %v208 = vld [vmem:[%s188 + $0x2c] sm:$0xf]
      %v209 = vld [vmem:[%s188 + $0x30] sm:$0xf]
      %v210 = vld [vmem:[%s188 + $0x34] sm:$0xf]
      %v211 = vld [vmem:[%s188 + $0x38] sm:$0xf]
      %v212 = vld [vmem:[%s188 + $0x3c] sm:$0xf]
      %v213 = vld [vmem:[%s1] sm:$0xf]
      %v214 = vld [vmem:[%s1 + $0x4] sm:$0xf]
      %v215 = vld [vmem:[%s1 + $0x8] sm:$0xf]
      %v216 = vld [vmem:[%s1 + $0xc] sm:$0xf]
      %v217 = vld [vmem:[%s1 + $0x10] sm:$0xf]
      %v218 = vld [vmem:[%s1 + $0x14] sm:$0xf]
      %v219 = vld [vmem:[%s1 + $0x18] sm:$0xf]
      %v220 = vld [vmem:[%s1 + $0x1c] sm:$0xf]
      %v221 = vld [vmem:[%s1 + $0x20] sm:$0xf]
      %v238 = vunpack.c.l.b16 %v197
      %v239 = vunpack.c.l.b16 %v198
      %v240 = vunpack.c.l.b16 %v199
      %v241 = vunpack.c.l.b16 %v200
      %v242 = vunpack.c.l.b16 %v201
      %v243 = vunpack.c.l.b16 %v202
      %v244 = vunpack.c.l.b16 %v203
      %v245 = vunpack.c.l.b16 %v204
      %v246 = vunpack.c.l.b16 %v205
      %v247 = vunpack.c.l.b16 %v206
      %v248 = vunpack.c.l.b16 %v207
      %v249 = vunpack.c.l.b16 %v208
      %v250 = vunpack.c.l.b16 %v209
      %v251 = vunpack.c.l.b16 %v210
      %v252 = vunpack.c.l.b16 %v211
      %v253 = vunpack.c.l.b16 %v212
      %v254 = vpack.c.b16 %v239, %v238
      %v255 = vpack.c.b16 %v241, %v240
      %v256 = vpack.c.b16 %v243, %v242
      %v257 = vpack.c.b16 %v245, %v244
      %v258 = vpack.c.b16 %v247, %v246
      %v259 = vpack.c.b16 %v249, %v248
      %v260 = vpack.c.b16 %v251, %v250
      %v261 = vpack.c.b16 %v253, %v252
      %v271 = vunpack.c.l.b16 %v213
      %v272 = vunpack.c.l.b16 %v214
      %v273 = vunpack.c.l.b16 %v215
      %v274 = vunpack.c.l.b16 %v216
      %v275 = vunpack.c.l.b16 %v217
      %v276 = vunpack.c.l.b16 %v218
      %v277 = vunpack.c.l.b16 %v219
      %v278 = vunpack.c.l.b16 %v220
      %v279 = vunpack.c.l.b16 %v221
      %v280 = vpack.c.b16 %v272, %v271
      %v281 = vpack.c.b16 %v274, %v273
      %v282 = vpack.c.b16 %v276, %v275
      %v283 = vpack.c.b16 %v278, %v277
      %v284 = vpack.c.b16 %v279, %v279
      %vm289 = vcmask 588800
      %v291 = vsel %vm289, %v254, 0
      %v294 = vsel %vm289, %v255, 0
      %v297 = vsel %vm289, %v256, 0
      %v300 = vsel %vm289, %v257, 0
      %v303 = vsel %vm289, %v258, 0
      %v306 = vsel %vm289, %v259, 0
      %v309 = vsel %vm289, %v260, 0
      %v312 = vsel %vm289, %v261, 0
      %vm314 = vcmask 1043456
      %v316 = vsel %vm314, %v284, 0
      %318 = vmatprep.subr.bf16.mxu0 0
      %319 = vmatpush1.bf16.msra.mxu0 0
      %320 = vmatprep.subr.bf16.mxu0 0
      %321 = vmatpush1.bf16.msra.mxu0 0
      %322 = vmatprep.subr.bf16.mxu0 0
      %323 = vmatpush1.bf16.msra.mxu0 0
      %324 = vmatprep.subr.bf16.mxu0 0
      %325 = vmatpush1.bf16.msra.mxu0 %v316
      %326 = vmatprep.subr.bf16.mxu0 0
      %327 = vmatpush1.bf16.msra.mxu0 %v283
      %328 = vmatprep.subr.bf16.mxu0 0
      %329 = vmatpush1.bf16.msra.mxu0 %v282
      %330 = vmatprep.subr.bf16.mxu0 0
      %331 = vmatpush1.bf16.msra.mxu0 %v281
      %332 = vmatprep.subr.bf16.mxu0 0
      %333 = vmatpush1.bf16.msra.mxu0 %v280
      %334 = vmatprep.subr.bf16.mxu0 0
      %335 = vmatpush2.bf16.msra.mxu0 0
      %336 = vmatprep.subr.bf16.mxu0 0
      %337 = vmatpush2.bf16.msra.mxu0 0
      %338 = vmatprep.subr.bf16.mxu0 0
      %339 = vmatpush2.bf16.msra.mxu0 0
      %340 = vmatprep.subr.bf16.mxu0 0
      %341 = vmatpush2.bf16.msra.mxu0 0
      %342 = vmatprep.subr.bf16.mxu0 0
      %343 = vmatpush2.bf16.msra.mxu0 0
      %344 = vmatprep.subr.bf16.mxu0 0
      %345 = vmatpush2.bf16.msra.mxu0 0
      %346 = vmatprep.subr.bf16.mxu0 0
      %347 = vmatpush2.bf16.msra.mxu0 0
      %348 = vmatprep.subr.bf16.mxu0 0
      %349 = vmatpush2.bf16.msra.mxu0 0
      %350 = vmatprep.mubr.bf16.mxu0 0
      %351 = vmatmul.mubr.bf16.gmra.mxu0 %v291
      %v352 = vpop.f32.mrf.mxu0
      %v353 = vadd.f32 0.0, %v352
      %v354 = vpop.f32.mrf.mxu0
      %v355 = vpop.f32.mrf.mxu0
      %v356 = vadd.f32 0.0, %v355
      %v357 = vpop.f32.mrf.mxu0
      %358 = vmatprep.mubr.bf16.mxu0 0
      %359 = vmatmul.mubr.bf16.gmra.mxu0 %v294
      %v360 = vpop.f32.mrf.mxu0
      %v361 = vadd.f32 0.0, %v360
      %v362 = vpop.f32.mrf.mxu0
      %v363 = vpop.f32.mrf.mxu0
      %v364 = vadd.f32 0.0, %v363
      %v365 = vpop.f32.mrf.mxu0
      %366 = vmatprep.mubr.bf16.mxu0 0
      %367 = vmatmul.mubr.bf16.gmra.mxu0 %v297
      %v368 = vpop.f32.mrf.mxu0
      %v369 = vadd.f32 0.0, %v368
      %v370 = vpop.f32.mrf.mxu0
      %v371 = vpop.f32.mrf.mxu0
      %v372 = vadd.f32 0.0, %v371
      %v373 = vpop.f32.mrf.mxu0
      %374 = vmatprep.mubr.bf16.mxu0 0
      %375 = vmatmul.mubr.bf16.gmra.mxu0 %v300
      %v376 = vpop.f32.mrf.mxu0
      %v377 = vadd.f32 0.0, %v376
      %v378 = vpop.f32.mrf.mxu0
      %v379 = vpop.f32.mrf.mxu0
      %v380 = vadd.f32 0.0, %v379
      %v381 = vpop.f32.mrf.mxu0
      %382 = vmatprep.mubr.bf16.mxu0 0
      %383 = vmatmul.mubr.bf16.gmra.mxu0 %v303
      %v384 = vpop.f32.mrf.mxu0
      %v385 = vadd.f32 0.0, %v384
      %v386 = vpop.f32.mrf.mxu0
      %v387 = vpop.f32.mrf.mxu0
      %v388 = vadd.f32 0.0, %v387
      %v389 = vpop.f32.mrf.mxu0
      %390 = vmatprep.mubr.bf16.mxu0 0
      %391 = vmatmul.mubr.bf16.gmra.mxu0 %v306
      %v392 = vpop.f32.mrf.mxu0
      %v393 = vadd.f32 0.0, %v392
      %v394 = vpop.f32.mrf.mxu0
      %v395 = vpop.f32.mrf.mxu0
      %v396 = vadd.f32 0.0, %v395
      %v397 = vpop.f32.mrf.mxu0
      %398 = vmatprep.mubr.bf16.mxu0 0
      %399 = vmatmul.mubr.bf16.gmra.mxu0 %v309
      %v400 = vpop.f32.mrf.mxu0
      %v401 = vadd.f32 0.0, %v400
      %v402 = vpop.f32.mrf.mxu0
      %v403 = vpop.f32.mrf.mxu0
      %v404 = vadd.f32 0.0, %v403
      %v405 = vpop.f32.mrf.mxu0
      %406 = vmatprep.mubr.bf16.mxu0 0
      %407 = vmatmul.mubr.bf16.gmra.mxu0 %v312
      %v408 = vpop.f32.mrf.mxu0
      %v409 = vadd.f32 0.0, %v408
      %v410 = vpop.f32.mrf.mxu0
      %v411 = vpop.f32.mrf.mxu0
      %v412 = vadd.f32 0.0, %v411
      %v413 = vpop.f32.mrf.mxu0
      %414 = vdwg.mxu0
      %415 = vst [vmem:[%s194] sm:$0xff] %v353
      %416 = vst [vmem:[%s194 + $0x8] sm:$0xff] %v356
      %417 = vst [vmem:[%s194 + $0x10] sm:$0xff] %v361
      %418 = vst [vmem:[%s194 + $0x18] sm:$0xff] %v364
      %419 = vst [vmem:[%s194 + $0x20] sm:$0xff] %v369
      %420 = vst [vmem:[%s194 + $0x28] sm:$0xff] %v372
      %421 = vst [vmem:[%s194 + $0x30] sm:$0xff] %v377
      %422 = vst [vmem:[%s194 + $0x38] sm:$0xff] %v380
      %423 = vst [vmem:[%s194 + $0x40] sm:$0xff] %v385
      %424 = vst [vmem:[%s194 + $0x48] sm:$0xff] %v388
      %425 = vst [vmem:[%s194 + $0x50] sm:$0xff] %v393
      %426 = vst [vmem:[%s194 + $0x58] sm:$0xff] %v396
      %427 = vst [vmem:[%s194 + $0x60] sm:$0xff] %v401
      %428 = vst [vmem:[%s194 + $0x68] sm:$0xff] %v404
      %429 = vst [vmem:[%s194 + $0x70] sm:$0xff] %v409
      %430 = vst [vmem:[%s194 + $0x78] sm:$0xff] %v412
      %p431 = scmp.eq.s32.totalorder %s16, 0
      // Predicated region
      $region29: #{masked_basic_block.8} parent=27 // pred_check
        %p432 = pneg %p431
      $region30: #{masked_basic_block.8} parent=27 // pred_check_branch
        %434 = sbr.rel (%p432) target = $region32
      $region31: #{masked_basic_block.8} parent=27 // pred_region
        %435 = vst [vmem:[%s3] sm:$0x1] 0.0
        %436 = vst [vmem:[%s4] sm:$0x1] 0.0
      $region32: #{masked_basic_block.8} parent=27 // pred_fallthru
        _
      %v437 = vld [vmem:[%s3] sm:$0x1]
      %v438 = vadd.f32 %v353, %v356
      %v439 = vadd.f32 %v438, %v361
      %v440 = vadd.f32 %v439, %v364
      %v441 = vadd.f32 %v440, %v369
      %v442 = vadd.f32 %v441, %v372
      %v443 = vadd.f32 %v442, %v377
      %v444 = vadd.f32 %v443, %v380
      %v445 = vadd.f32 %v444, %v385
      %v446 = vadd.f32 %v445, %v388
      %v447 = vadd.f32 %v446, %v393
      %v448 = vadd.f32 %v447, %v396
      %v449 = vadd.f32 %v448, %v401
      %v450 = vadd.f32 %v449, %v404
      %v451 = vadd.f32 %v450, %v409
      %v452 = vadd.f32 %v451, %v412
      %v453 = vrot.slane %v452, 4
      %v454 = vadd.f32 %v452, %v453
      %v455 = vrot.slane %v454, 2
      %v456 = vadd.f32 %v454, %v455
      %v457 = vrot.slane %v456, 1
      %v458 = vadd.f32 %v456, %v457
      %v459 = vadd.f32 %v437, %v458
      %460 = vst [vmem:[%s3] sm:$0x1] %v459
      %v461 = vld [vmem:[%s4] sm:$0x1]
      %v462 = vmul.f32 %v353, %v353
      %v463 = vmul.f32 %v356, %v356
      %v464 = vmul.f32 %v361, %v361
      %v465 = vmul.f32 %v364, %v364
      %v466 = vmul.f32 %v369, %v369
      %v467 = vmul.f32 %v372, %v372
      %v468 = vmul.f32 %v377, %v377
      %v469 = vmul.f32 %v380, %v380
      %v470 = vmul.f32 %v385, %v385
      %v471 = vmul.f32 %v388, %v388
      %v472 = vmul.f32 %v393, %v393
      %v473 = vmul.f32 %v396, %v396
      %v474 = vmul.f32 %v401, %v401
      %v475 = vmul.f32 %v404, %v404
      %v476 = vmul.f32 %v409, %v409
      %v477 = vmul.f32 %v412, %v412
      %v478 = vadd.f32 %v462, %v463
      %v479 = vadd.f32 %v478, %v464
      %v480 = vadd.f32 %v479, %v465
      %v481 = vadd.f32 %v480, %v466
      %v482 = vadd.f32 %v481, %v467
      %v483 = vadd.f32 %v482, %v468
      %v484 = vadd.f32 %v483, %v469
      %v485 = vadd.f32 %v484, %v470
      %v486 = vadd.f32 %v485, %v471
      %v487 = vadd.f32 %v486, %v472
      %v488 = vadd.f32 %v487, %v473
      %v489 = vadd.f32 %v488, %v474
      %v490 = vadd.f32 %v489, %v475
      %v491 = vadd.f32 %v490, %v476
      %v492 = vadd.f32 %v491, %v477
      %v493 = vrot.slane %v492, 4
      %v494 = vadd.f32 %v492, %v493
      %v495 = vrot.slane %v494, 2
      %v496 = vadd.f32 %v494, %v495
      %v497 = vrot.slane %v496, 1
      %v498 = vadd.f32 %v496, %v497
      %v499 = vadd.f32 %v461, %v498
      %500 = vst [vmem:[%s4] sm:$0x1] %v499
      %s501 = smul.u32 16, %s16
      %p502 = scmp.lt.s32.totalorder %s501, 63
      %s503 = scalar_select %p502, %s501, 63
      %s504 = smul.addr %s503, 8
      %s505 = scalar_lea.vmem %s2, %s504
      // Predicated region
      $region33: #{masked_basic_block.8} parent=27 // pred_check
        %p506 = pneg %p81
      $region34: #{masked_basic_block.8} parent=27 // pred_check_branch
        %508 = sbr.rel (%p506) target = $region36
      $region35: #{masked_basic_block.8} parent=27 // pred_region
        %s509 = smul.u32 16, %s16
      $region36: #{masked_basic_block.8} parent=27 // pred_fallthru
        _
      // Predicated region
      $region37: #{masked_basic_block.8} parent=27 // pred_check
        %p510 = pneg %p102
      $region38: #{masked_basic_block.8} parent=27 // pred_check_branch
        %512 = sbr.rel (%p510) target = $region40
      $region39: #{masked_basic_block.8} parent=27 // pred_region
        _
      $region40: #{masked_basic_block.8} parent=27 // pred_fallthru
        _
      // Predicated region
      $region41: #{masked_basic_block.8} parent=27 // pred_check
        %p513 = pneg %p123
      $region42: #{masked_basic_block.8} parent=27 // pred_check_branch
        %515 = sbr.rel (%p513) target = $region44
      $region43: #{masked_basic_block.8} parent=27 // pred_region
        _
      $region44: #{masked_basic_block.8} parent=27 // pred_fallthru
        _
      // Predicated region
      $region45: #{masked_basic_block.8} parent=27 // pred_check
        %p516 = pneg %p102
      $region46: #{masked_basic_block.8} parent=27 // pred_check_branch
        %518 = sbr.rel (%p516) target = $region48
      $region47: #{masked_basic_block.8} parent=27 // pred_region
        _
      $region48: #{masked_basic_block.8} parent=27 // pred_fallthru
        _
      // Predicated region
      $region49: #{masked_basic_block.8} parent=27 // pred_check
        %p519 = pneg %p123
      $region50: #{masked_basic_block.8} parent=27 // pred_check_branch
        %521 = sbr.rel (%p519) target = $region52
      $region51: #{masked_basic_block.8} parent=27 // pred_region
        _
      $region52: #{masked_basic_block.8} parent=27 // pred_fallthru
        _
    $region28: #{masked_basic_block.8} parent=5 // pred_fallthru
      _
    %p522 = scmp.le.s32.totalorder 2, %s11
    // Predicated region
    $region53: #{masked_basic_block.8} parent=5 // pred_check
      %p523 = pneg %p522
    $region54: #{masked_basic_block.8} parent=5 // pred_check_branch
      %525 = sbr.rel (%p523) target = $region56
    $region55: #{masked_basic_block.8} parent=5 // pred_region
      %s526 = ssub.s32 %s11, 2
      // Predicated region
      $region57: #{masked_basic_block.8} parent=55 // pred_check
        %p527 = pneg %p87
      $region58: #{masked_basic_block.8} parent=55 // pred_check_branch
        %529 = sbr.rel (%p527) target = $region60
      $region59: #{masked_basic_block.8} parent=55 // pred_region
        %s530 = smul.u32 16, %s17
        %p531 = scmp.lt.s32.totalorder %s530, 63
        %s532 = scalar_select %p531, %s530, 63
        %s533 = smul.addr %s532, 8
        %s534 = scalar_lea.vmem %s2, %s533
      $region60: #{masked_basic_block.8} parent=55 // pred_fallthru
        _
    $region56: #{masked_basic_block.8} parent=5 // pred_fallthru
      _
  $region6: #{masked_basic_block.8} parent=0 // loop_footer
    %s15 = sadd.s32 1, %s11
  $region7: #{masked_basic_block.8} parent=0 // loop_footer_branch
    %10 = sbr.rel target = $region3
  $region8: #{masked_basic_block.8} parent=0 // loop_exit
    _

// kernel: masked_basic_block.7
$region0: #{masked_basic_block.7}
  #allocation0 [shape = 'u32[]', space=smem, size = 0x4, offset = 0x4, fixed_abs, tag = 'smem constant byte address 0x4 - core index']
  #allocation1 [shape = 'u32[144,128]{1,0:T(1,128)}', space=vmem, size = 0x12000, scoped, tag = 'internal scratch']
  %s0 = inlined_call_operand.vmem [shape: bf16[512,4], index: 0, kind: input, shape index: {}]
  %s1 = inlined_call_operand.vmem [shape: bf16[4,128], index: 1, kind: input, shape index: {}]
  %s2 = inlined_call_operand.vmem [shape: f32[512,128], index: 2, kind: output, shape index: {0}]
  %s3 = inlined_call_operand.vmem [shape: f32[1,128], index: 3, kind: output, shape index: {1}]
  %s4 = inlined_call_operand.vmem [shape: f32[1,128], index: 4, kind: output, shape index: {2}]
  %5 = xla_tuple %s2, %s3, %s4
  %s6 = sld [smem:[#allocation0]]
  $region61: #{masked_basic_block.7} parent=0
    _
  %s8 = ssub.s32 1, %s6
  %s9 = scalar_select 0, %s8, %s6
  loop: start=0, step=1, limit=6
  $region2: #{masked_basic_block.7} parent=0 // loop_pre_header
    _
  $region3: #{masked_basic_block.7} parent=0 // loop_header
    %s11 = sphi 0, %s15
    %p12 = scmp.ge.s32.totalorder %s11, 6
    %s21 = sphi 0, %s23
    %s24 = sphi 0, %s21
    %s25 = sphi 0, %s24
    %s41 = sphi 0, %s25
    %s45 = sphi 0, %s45
    %s47 = sphi 0, %s45
    %s48 = sphi 0, %s47
    %s62 = sphi 0, %s48
    %s68 = sphi 0, %s70
    %s71 = sphi 0, %s68
    %s72 = sphi 0, %s71
    %s88 = sphi 0, %s72
    %s92 = sphi 0, %s92
    %s94 = sphi 0, %s92
    %s95 = sphi 0, %s94
    %s109 = sphi 0, %s95
    %s113 = sphi 0, %s113
    %s115 = sphi 0, %s113
    %s116 = sphi 0, %s115
    %s130 = sphi 0, %s116
  $region4: #{masked_basic_block.7} parent=0 // loop_header_branch
    %14 = sbr.rel (%p12) target = $region8
  $region5: #{masked_basic_block.7} parent=0 // loop_body
    %s16 = ssub.s32 %s11, 1
    %s17 = ssub.s32 %s11, 2
    %s18 = sadd.s32 %s11, 1
    %s19 = ssub.s32 %s11, %s18
    %p20 = scmp.eq.s32.totalorder %s19, 0
    %s22 = sadd.s32 %s21, 1
    %s23 = scalar_select %p20, %s21, %s22
    %p26 = pneg %p20
    %p27 = scmp.eq.s32.totalorder %s11, 3
    %p28 = por %p26, %p27
    %p29 = scmp.ne.s32.totalorder %s21, %s24
    %p30 = scmp.eq.s32.totalorder %s11, 0
    %p31 = por %p29, %p30
    %p32 = scmp.ne.s32.totalorder %s21, %s24
    %p33 = scmp.eq.s32.totalorder %s16, 3
    %p34 = por %p32, %p33
    %p35 = scmp.ne.s32.totalorder %s24, %s25
    %p36 = scmp.eq.s32.totalorder %s16, 0
    %p37 = por %p35, %p36
    %p38 = scmp.ne.s32.totalorder %s24, %s25
    %p39 = scmp.eq.s32.totalorder %s17, 3
    %p40 = por %p38, %p39
    %p42 = scmp.ne.s32.totalorder %s25, %s41
    %p43 = scmp.eq.s32.totalorder %s17, 0
    %p44 = por %p42, %p43
    %s46 = sadd.s32 %s45, 1
    %p49 = scmp.eq.s32.totalorder %s11, 3
    %p50 = scmp.ne.s32.totalorder %s45, %s47
    %p51 = scmp.eq.s32.totalorder %s11, 0
    %p52 = por %p50, %p51
    %p53 = scmp.ne.s32.totalorder %s45, %s47
    %p54 = scmp.eq.s32.totalorder %s16, 3
    %p55 = por %p53, %p54
    %p56 = scmp.ne.s32.totalorder %s47, %s48
    %p57 = scmp.eq.s32.totalorder %s16, 0
    %p58 = por %p56, %p57
    %p59 = scmp.ne.s32.totalorder %s47, %s48
    %p60 = scmp.eq.s32.totalorder %s17, 3
    %p61 = por %p59, %p60
    %p63 = scmp.ne.s32.totalorder %s48, %s62
    %p64 = scmp.eq.s32.totalorder %s17, 0
    %p65 = por %p63, %p64
    %s66 = ssub.s32 %s11, %s18
    %p67 = scmp.eq.s32.totalorder %s66, 0
    %s69 = sadd.s32 %s68, 1
    %s70 = scalar_select %p67, %s68, %s69
    %p73 = pneg %p67
    %p74 = scmp.eq.s32.totalorder %s11, 3
    %p75 = por %p73, %p74
    %p76 = scmp.ne.s32.totalorder %s68, %s71
    %p77 = scmp.eq.s32.totalorder %s11, 0
    %p78 = por %p76, %p77
    %p79 = scmp.ne.s32.totalorder %s68, %s71
    %p80 = scmp.eq.s32.totalorder %s16, 3
    %p81 = por %p79, %p80
    %p82 = scmp.ne.s32.totalorder %s71, %s72
    %p83 = scmp.eq.s32.totalorder %s16, 0
    %p84 = por %p82, %p83
    %p85 = scmp.ne.s32.totalorder %s71, %s72
    %p86 = scmp.eq.s32.totalorder %s17, 3
    %p87 = por %p85, %p86
    %p89 = scmp.ne.s32.totalorder %s72, %s88
    %p90 = scmp.eq.s32.totalorder %s17, 0
    %p91 = por %p89, %p90
    %s93 = sadd.s32 %s92, 1
    %p96 = scmp.eq.s32.totalorder %s11, 3
    %p97 = scmp.ne.s32.totalorder %s92, %s94
    %p98 = scmp.eq.s32.totalorder %s11, 0
    %p99 = por %p97, %p98
    %p100 = scmp.ne.s32.totalorder %s92, %s94
    %p101 = scmp.eq.s32.totalorder %s16, 3
    %p102 = por %p100, %p101
    %p103 = scmp.ne.s32.totalorder %s94, %s95
    %p104 = scmp.eq.s32.totalorder %s16, 0
    %p105 = por %p103, %p104
    %p106 = scmp.ne.s32.totalorder %s94, %s95
    %p107 = scmp.eq.s32.totalorder %s17, 3
    %p108 = por %p106, %p107
    %p110 = scmp.ne.s32.totalorder %s95, %s109
    %p111 = scmp.eq.s32.totalorder %s17, 0
    %p112 = por %p110, %p111
    %s114 = sadd.s32 %s113, 1
    %p117 = scmp.eq.s32.totalorder %s11, 3
    %p118 = scmp.ne.s32.totalorder %s113, %s115
    %p119 = scmp.eq.s32.totalorder %s11, 0
    %p120 = por %p118, %p119
    %p121 = scmp.ne.s32.totalorder %s113, %s115
    %p122 = scmp.eq.s32.totalorder %s16, 3
    %p123 = por %p121, %p122
    %p124 = scmp.ne.s32.totalorder %s115, %s116
    %p125 = scmp.eq.s32.totalorder %s16, 0
    %p126 = por %p124, %p125
    %p127 = scmp.ne.s32.totalorder %s115, %s116
    %p128 = scmp.eq.s32.totalorder %s17, 3
    %p129 = por %p127, %p128
    %p131 = scmp.ne.s32.totalorder %s116, %s130
    %p132 = scmp.eq.s32.totalorder %s17, 0
    %p133 = por %p131, %p132
    %p134 = scmp.le.s32.totalorder 1, %s11
    %p135 = scmp.lt.s32.totalorder %s11, 5
    %p136 = pnand %p134, %p135
    %p137 = pneg %p136
    // Predicated region
    $region9: #{masked_basic_block.7} parent=5 // pred_check
      _
    $region10: #{masked_basic_block.7} parent=5 // pred_check_branch
      %139 = sbr.rel (%p136) target = $region12
    $region11: #{masked_basic_block.7} parent=5 // pred_region
      %s140 = ssub.s32 %s11, 1
      // Predicated region
      $region13: #{masked_basic_block.7} parent=11 // pred_check
        %p141 = pneg %p58
      $region14: #{masked_basic_block.7} parent=11 // pred_check_branch
        %143 = sbr.rel (%p141) target = $region16
      $region15: #{masked_basic_block.7} parent=11 // pred_region
        _
      $region16: #{masked_basic_block.7} parent=11 // pred_fallthru
        _
    $region12: #{masked_basic_block.7} parent=5 // pred_fallthru
      _
    %p144 = scmp.lt.s32.totalorder %s11, 4
    // Predicated region
    $region17: #{masked_basic_block.7} parent=5 // pred_check
      %p145 = pneg %p144
    $region18: #{masked_basic_block.7} parent=5 // pred_check_branch
      %147 = sbr.rel (%p145) target = $region20
    $region19: #{masked_basic_block.7} parent=5 // pred_region
      // Predicated region
      $region21: #{masked_basic_block.7} parent=19 // pred_check
        %p148 = pneg %p31
      $region22: #{masked_basic_block.7} parent=19 // pred_check_branch
        %150 = sbr.rel (%p148) target = $region24
      $region23: #{masked_basic_block.7} parent=19 // pred_region
        %s151 = smul.u32 16, %s11
        %p152 = scmp.lt.s32.totalorder %s151, 63
        %s153 = scalar_select %p152, %s151, 63
        %s154 = smul.addr %s153, 4
        %s155 = scalar_lea.vmem %s0, %s154
        %s156 = smul.u32 16, %s11
      $region24: #{masked_basic_block.7} parent=19 // pred_fallthru
        _
    $region20: #{masked_basic_block.7} parent=5 // pred_fallthru
      _
    %p157 = scmp.le.s32.totalorder 1, %s11
    %p158 = scmp.lt.s32.totalorder %s11, 5
    %p159 = pnand %p157, %p158
    %p160 = pneg %p159
    // Predicated region
    $region25: #{masked_basic_block.7} parent=5 // pred_check
      _
    $region26: #{masked_basic_block.7} parent=5 // pred_check_branch
      %162 = sbr.rel (%p159) target = $region28
    $region27: #{masked_basic_block.7} parent=5 // pred_region
      %s163 = ssub.s32 %s11, 1
      %s164 = smul.u32 16, %s16
      %p165 = scmp.lt.s32.totalorder %s164, 63
      %s166 = scalar_select %p165, %s164, 63
      %s167 = smul.addr %s166, 4
      %s168 = scalar_lea.vmem %s0, %s167
      %p169 = pneg %p37
      %p170 = pneg %p34
      %p171 = pneg %p58
      %p172 = pneg %p55
      %p173 = pneg %p84
      %p174 = pneg %p81
      %s175 = smul.u32 16, %s16
      %p176 = scmp.lt.s32.totalorder %s175, 63
      %s177 = scalar_select %p176, %s175, 63
      %s178 = smul.addr %s177, 8
      %s179 = scalar_lea.vmem %s2, %s178
      %p180 = pneg %p105
      %p181 = pneg %p102
      %p182 = pneg %p126
      %p183 = pneg %p123
      %s184 = smul.u32 16, %s16
      %p185 = scmp.lt.s32.totalorder %s184, 63
      %s186 = scalar_select %p185, %s184, 63
      %s187 = smul.addr %s186, 4
      %s188 = scalar_lea.vmem %s0, %s187
      %s189 = smul.u32 16, %s16
      %s190 = smul.u32 16, %s16
      %p191 = scmp.lt.s32.totalorder %s190, 63
      %s192 = scalar_select %p191, %s190, 63
      %s193 = smul.addr %s192, 8
      %s194 = scalar_lea.vmem %s2, %s193
      %s195 = smul.u32 16, %s16
      %v197 = vld [vmem:[%s188] sm:$0xf]
      %v198 = vld [vmem:[%s188 + $0x4] sm:$0xf]
      %v199 = vld [vmem:[%s188 + $0x8] sm:$0xf]
      %v200 = vld [vmem:[%s188 + $0xc] sm:$0xf]
      %v201 = vld [vmem:[%s188 + $0x10] sm:$0xf]
      %v202 = vld [vmem:[%s188 + $0x14] sm:$0xf]
      %v203 = vld [vmem:[%s188 + $0x18] sm:$0xf]
      %v204 = vld [vmem:[%s188 + $0x1c] sm:$0xf]
      %v205 = vld [vmem:[%s188 + $0x20] sm:$0xf]
      %v206 = vld [vmem:[%s188 + $0x24] sm:$0xf]
      %v207 = vld [vmem:[%s188 + $0x28] sm:$0xf]
      %v208 = vld [vmem:[%s188 + $0x2c] sm:$0xf]
      %v209 = vld [vmem:[%s188 + $0x30] sm:$0xf]
      %v210 = vld [vmem:[%s188 + $0x34] sm:$0xf]
      %v211 = vld [vmem:[%s188 + $0x38] sm:$0xf]
      %v212 = vld [vmem:[%s188 + $0x3c] sm:$0xf]
      %v213 = vld [vmem:[%s1] sm:$0x3]
      %v230 = vunpack.c.l.b16 %v197
      %v231 = vunpack.c.l.b16 %v198
      %v232 = vunpack.c.l.b16 %v199
      %v233 = vunpack.c.l.b16 %v200
      %v234 = vunpack.c.l.b16 %v201
      %v235 = vunpack.c.l.b16 %v202
      %v236 = vunpack.c.l.b16 %v203
      %v237 = vunpack.c.l.b16 %v204
      %v238 = vunpack.c.l.b16 %v205
      %v239 = vunpack.c.l.b16 %v206
      %v240 = vunpack.c.l.b16 %v207
      %v241 = vunpack.c.l.b16 %v208
      %v242 = vunpack.c.l.b16 %v209
      %v243 = vunpack.c.l.b16 %v210
      %v244 = vunpack.c.l.b16 %v211
      %v245 = vunpack.c.l.b16 %v212
      %v246 = vpack.c.b16 %v231, %v230
      %v247 = vpack.c.b16 %v233, %v232
      %v248 = vpack.c.b16 %v235, %v234
      %v249 = vpack.c.b16 %v237, %v236
      %v250 = vpack.c.b16 %v239, %v238
      %v251 = vpack.c.b16 %v241, %v240
      %v252 = vpack.c.b16 %v243, %v242
      %v253 = vpack.c.b16 %v245, %v244
      %vm254 = vcmask 31744
      %v256 = vsel %vm254, %v246, 0
      %v259 = vsel %vm254, %v247, 0
      %v262 = vsel %vm254, %v248, 0
      %v265 = vsel %vm254, %v249, 0
      %v268 = vsel %vm254, %v250, 0
      %v271 = vsel %vm254, %v251, 0
      %v274 = vsel %vm254, %v252, 0
      %v277 = vsel %vm254, %v253, 0
      %vm279 = vcmask 1041408
      %v281 = vsel %vm279, %v213, 0
      %283 = vmatprep.subr.bf16.mxu0 0
      %284 = vmatpush1.bf16.msra.mxu0 0
      %285 = vmatprep.subr.bf16.mxu0 0
      %286 = vmatpush1.bf16.msra.mxu0 0
      %287 = vmatprep.subr.bf16.mxu0 0
      %288 = vmatpush1.bf16.msra.mxu0 0
      %289 = vmatprep.subr.bf16.mxu0 0
      %290 = vmatpush1.bf16.msra.mxu0 0
      %291 = vmatprep.subr.bf16.mxu0 0
      %292 = vmatpush1.bf16.msra.mxu0 0
      %293 = vmatprep.subr.bf16.mxu0 0
      %294 = vmatpush1.bf16.msra.mxu0 0
      %295 = vmatprep.subr.bf16.mxu0 0
      %296 = vmatpush1.bf16.msra.mxu0 0
      %297 = vmatprep.subr.bf16.mxu0 0
      %298 = vmatpush1.bf16.msra.mxu0 %v281
      %299 = vmatprep.subr.bf16.mxu0 0
      %300 = vmatpush2.bf16.msra.mxu0 0
      %301 = vmatprep.subr.bf16.mxu0 0
      %302 = vmatpush2.bf16.msra.mxu0 0
      %303 = vmatprep.subr.bf16.mxu0 0
      %304 = vmatpush2.bf16.msra.mxu0 0
      %305 = vmatprep.subr.bf16.mxu0 0
      %306 = vmatpush2.bf16.msra.mxu0 0
      %307 = vmatprep.subr.bf16.mxu0 0
      %308 = vmatpush2.bf16.msra.mxu0 0
      %309 = vmatprep.subr.bf16.mxu0 0
      %310 = vmatpush2.bf16.msra.mxu0 0
      %311 = vmatprep.subr.bf16.mxu0 0
      %312 = vmatpush2.bf16.msra.mxu0 0
      %313 = vmatprep.subr.bf16.mxu0 0
      %314 = vmatpush2.bf16.msra.mxu0 0
      %315 = vmatprep.mubr.bf16.mxu0 0
      %316 = vmatmul.mubr.bf16.gmra.mxu0 %v256
      %v317 = vpop.f32.mrf.mxu0
      %v318 = vadd.f32 0.0, %v317
      %v319 = vpop.f32.mrf.mxu0
      %v320 = vpop.f32.mrf.mxu0
      %v321 = vadd.f32 0.0, %v320
      %v322 = vpop.f32.mrf.mxu0
      %323 = vmatprep.mubr.bf16.mxu0 0
      %324 = vmatmul.mubr.bf16.gmra.mxu0 %v259
      %v325 = vpop.f32.mrf.mxu0
      %v326 = vadd.f32 0.0, %v325
      %v327 = vpop.f32.mrf.mxu0
      %v328 = vpop.f32.mrf.mxu0
      %v329 = vadd.f32 0.0, %v328
      %v330 = vpop.f32.mrf.mxu0
      %331 = vmatprep.mubr.bf16.mxu0 0
      %332 = vmatmul.mubr.bf16.gmra.mxu0 %v262
      %v333 = vpop.f32.mrf.mxu0
      %v334 = vadd.f32 0.0, %v333
      %v335 = vpop.f32.mrf.mxu0
      %v336 = vpop.f32.mrf.mxu0
      %v337 = vadd.f32 0.0, %v336
      %v338 = vpop.f32.mrf.mxu0
      %339 = vmatprep.mubr.bf16.mxu0 0
      %340 = vmatmul.mubr.bf16.gmra.mxu0 %v265
      %v341 = vpop.f32.mrf.mxu0
      %v342 = vadd.f32 0.0, %v341
      %v343 = vpop.f32.mrf.mxu0
      %v344 = vpop.f32.mrf.mxu0
      %v345 = vadd.f32 0.0, %v344
      %v346 = vpop.f32.mrf.mxu0
      %347 = vmatprep.mubr.bf16.mxu0 0
      %348 = vmatmul.mubr.bf16.gmra.mxu0 %v268
      %v349 = vpop.f32.mrf.mxu0
      %v350 = vadd.f32 0.0, %v349
      %v351 = vpop.f32.mrf.mxu0
      %v352 = vpop.f32.mrf.mxu0
      %v353 = vadd.f32 0.0, %v352
      %v354 = vpop.f32.mrf.mxu0
      %355 = vmatprep.mubr.bf16.mxu0 0
      %356 = vmatmul.mubr.bf16.gmra.mxu0 %v271
      %v357 = vpop.f32.mrf.mxu0
      %v358 = vadd.f32 0.0, %v357
      %v359 = vpop.f32.mrf.mxu0
      %v360 = vpop.f32.mrf.mxu0
      %v361 = vadd.f32 0.0, %v360
      %v362 = vpop.f32.mrf.mxu0
      %363 = vmatprep.mubr.bf16.mxu0 0
      %364 = vmatmul.mubr.bf16.gmra.mxu0 %v274
      %v365 = vpop.f32.mrf.mxu0
      %v366 = vadd.f32 0.0, %v365
      %v367 = vpop.f32.mrf.mxu0
      %v368 = vpop.f32.mrf.mxu0
      %v369 = vadd.f32 0.0, %v368
      %v370 = vpop.f32.mrf.mxu0
      %371 = vmatprep.mubr.bf16.mxu0 0
      %372 = vmatmul.mubr.bf16.gmra.mxu0 %v277
      %v373 = vpop.f32.mrf.mxu0
      %v374 = vadd.f32 0.0, %v373
      %v375 = vpop.f32.mrf.mxu0
      %v376 = vpop.f32.mrf.mxu0
      %v377 = vadd.f32 0.0, %v376
      %v378 = vpop.f32.mrf.mxu0
      %379 = vdwg.mxu0
      %380 = vst [vmem:[%s194] sm:$0xff] %v318
      %381 = vst [vmem:[%s194 + $0x8] sm:$0xff] %v321
      %382 = vst [vmem:[%s194 + $0x10] sm:$0xff] %v326
      %383 = vst [vmem:[%s194 + $0x18] sm:$0xff] %v329
      %384 = vst [vmem:[%s194 + $0x20] sm:$0xff] %v334
      %385 = vst [vmem:[%s194 + $0x28] sm:$0xff] %v337
      %386 = vst [vmem:[%s194 + $0x30] sm:$0xff] %v342
      %387 = vst [vmem:[%s194 + $0x38] sm:$0xff] %v345
      %388 = vst [vmem:[%s194 + $0x40] sm:$0xff] %v350
      %389 = vst [vmem:[%s194 + $0x48] sm:$0xff] %v353
      %390 = vst [vmem:[%s194 + $0x50] sm:$0xff] %v358
      %391 = vst [vmem:[%s194 + $0x58] sm:$0xff] %v361
      %392 = vst [vmem:[%s194 + $0x60] sm:$0xff] %v366
      %393 = vst [vmem:[%s194 + $0x68] sm:$0xff] %v369
      %394 = vst [vmem:[%s194 + $0x70] sm:$0xff] %v374
      %395 = vst [vmem:[%s194 + $0x78] sm:$0xff] %v377
      %p396 = scmp.eq.s32.totalorder %s16, 0
      // Predicated region
      $region29: #{masked_basic_block.7} parent=27 // pred_check
        %p397 = pneg %p396
      $region30: #{masked_basic_block.7} parent=27 // pred_check_branch
        %399 = sbr.rel (%p397) target = $region32
      $region31: #{masked_basic_block.7} parent=27 // pred_region
        %400 = vst [vmem:[%s3] sm:$0x1] 0.0
        %401 = vst [vmem:[%s4] sm:$0x1] 0.0
      $region32: #{masked_basic_block.7} parent=27 // pred_fallthru
        _
      %v402 = vld [vmem:[%s3] sm:$0x1]
      %v403 = vadd.f32 %v318, %v321
      %v404 = vadd.f32 %v403, %v326
      %v405 = vadd.f32 %v404, %v329
      %v406 = vadd.f32 %v405, %v334
      %v407 = vadd.f32 %v406, %v337
      %v408 = vadd.f32 %v407, %v342
      %v409 = vadd.f32 %v408, %v345
      %v410 = vadd.f32 %v409, %v350
      %v411 = vadd.f32 %v410, %v353
      %v412 = vadd.f32 %v411, %v358
      %v413 = vadd.f32 %v412, %v361
      %v414 = vadd.f32 %v413, %v366
      %v415 = vadd.f32 %v414, %v369
      %v416 = vadd.f32 %v415, %v374
      %v417 = vadd.f32 %v416, %v377
      %v418 = vrot.slane %v417, 4
      %v419 = vadd.f32 %v417, %v418
      %v420 = vrot.slane %v419, 2
      %v421 = vadd.f32 %v419, %v420
      %v422 = vrot.slane %v421, 1
      %v423 = vadd.f32 %v421, %v422
      %v424 = vadd.f32 %v402, %v423
      %425 = vst [vmem:[%s3] sm:$0x1] %v424
      %v426 = vld [vmem:[%s4] sm:$0x1]
      %v427 = vmul.f32 %v318, %v318
      %v428 = vmul.f32 %v321, %v321
      %v429 = vmul.f32 %v326, %v326
      %v430 = vmul.f32 %v329, %v329
      %v431 = vmul.f32 %v334, %v334
      %v432 = vmul.f32 %v337, %v337
      %v433 = vmul.f32 %v342, %v342
      %v434 = vmul.f32 %v345, %v345
      %v435 = vmul.f32 %v350, %v350
      %v436 = vmul.f32 %v353, %v353
      %v437 = vmul.f32 %v358, %v358
      %v438 = vmul.f32 %v361, %v361
      %v439 = vmul.f32 %v366, %v366
      %v440 = vmul.f32 %v369, %v369
      %v441 = vmul.f32 %v374, %v374
      %v442 = vmul.f32 %v377, %v377
      %v443 = vadd.f32 %v427, %v428
      %v444 = vadd.f32 %v443, %v429
      %v445 = vadd.f32 %v444, %v430
      %v446 = vadd.f32 %v445, %v431
      %v447 = vadd.f32 %v446, %v432
      %v448 = vadd.f32 %v447, %v433
      %v449 = vadd.f32 %v448, %v434
      %v450 = vadd.f32 %v449, %v435
      %v451 = vadd.f32 %v450, %v436
      %v452 = vadd.f32 %v451, %v437
      %v453 = vadd.f32 %v452, %v438
      %v454 = vadd.f32 %v453, %v439
      %v455 = vadd.f32 %v454, %v440
      %v456 = vadd.f32 %v455, %v441
      %v457 = vadd.f32 %v456, %v442
      %v458 = vrot.slane %v457, 4
      %v459 = vadd.f32 %v457, %v458
      %v460 = vrot.slane %v459, 2
      %v461 = vadd.f32 %v459, %v460
      %v462 = vrot.slane %v461, 1
      %v463 = vadd.f32 %v461, %v462
      %v464 = vadd.f32 %v426, %v463
      %465 = vst [vmem:[%s4] sm:$0x1] %v464
      %s466 = smul.u32 16, %s16
      %p467 = scmp.lt.s32.totalorder %s466, 63
      %s468 = scalar_select %p467, %s466, 63
      %s469 = smul.addr %s468, 8
      %s470 = scalar_lea.vmem %s2, %s469
      // Predicated region
      $region33: #{masked_basic_block.7} parent=27 // pred_check
        %p471 = pneg %p81
      $region34: #{masked_basic_block.7} parent=27 // pred_check_branch
        %473 = sbr.rel (%p471) target = $region36
      $region35: #{masked_basic_block.7} parent=27 // pred_region
        %s474 = smul.u32 16, %s16
      $region36: #{masked_basic_block.7} parent=27 // pred_fallthru
        _
      // Predicated region
      $region37: #{masked_basic_block.7} parent=27 // pred_check
        %p475 = pneg %p102
      $region38: #{masked_basic_block.7} parent=27 // pred_check_branch
        %477 = sbr.rel (%p475) target = $region40
      $region39: #{masked_basic_block.7} parent=27 // pred_region
        _
      $region40: #{masked_basic_block.7} parent=27 // pred_fallthru
        _
      // Predicated region
      $region41: #{masked_basic_block.7} parent=27 // pred_check
        %p478 = pneg %p123
      $region42: #{masked_basic_block.7} parent=27 // pred_check_branch
        %480 = sbr.rel (%p478) target = $region44
      $region43: #{masked_basic_block.7} parent=27 // pred_region
        _
      $region44: #{masked_basic_block.7} parent=27 // pred_fallthru
        _
      // Predicated region
      $region45: #{masked_basic_block.7} parent=27 // pred_check
        %p481 = pneg %p102
      $region46: #{masked_basic_block.7} parent=27 // pred_check_branch
        %483 = sbr.rel (%p481) target = $region48
      $region47: #{masked_basic_block.7} parent=27 // pred_region
        _
      $region48: #{masked_basic_block.7} parent=27 // pred_fallthru
        _
      // Predicated region
      $region49: #{masked_basic_block.7} parent=27 // pred_check
        %p484 = pneg %p123
      $region50: #{masked_basic_block.7} parent=27 // pred_check_branch
        %486 = sbr.rel (%p484) target = $region52
      $region51: #{masked_basic_block.7} parent=27 // pred_region
        _
      $region52: #{masked_basic_block.7} parent=27 // pred_fallthru
        _
    $region28: #{masked_basic_block.7} parent=5 // pred_fallthru
      _
    %p487 = scmp.le.s32.totalorder 2, %s11
    // Predicated region
    $region53: #{masked_basic_block.7} parent=5 // pred_check
      %p488 = pneg %p487
    $region54: #{masked_basic_block.7} parent=5 // pred_check_branch
      %490 = sbr.rel (%p488) target = $region56
    $region55: #{masked_basic_block.7} parent=5 // pred_region
      %s491 = ssub.s32 %s11, 2
      // Predicated region
      $region57: #{masked_basic_block.7} parent=55 // pred_check
        %p492 = pneg %p87
      $region58: #{masked_basic_block.7} parent=55 // pred_check_branch
        %494 = sbr.rel (%p492) target = $region60
      $region59: #{masked_basic_block.7} parent=55 // pred_region
        %s495 = smul.u32 16, %s17
        %p496 = scmp.lt.s32.totalorder %s495, 63
        %s497 = scalar_select %p496, %s495, 63
        %s498 = smul.addr %s497, 8
        %s499 = scalar_lea.vmem %s2, %s498
      $region60: #{masked_basic_block.7} parent=55 // pred_fallthru
        _
    $region56: #{masked_basic_block.7} parent=5 // pred_fallthru
      _
  $region6: #{masked_basic_block.7} parent=0 // loop_footer
    %s15 = sadd.s32 1, %s11
  $region7: #{masked_basic_block.7} parent=0 // loop_footer_branch
    %10 = sbr.rel target = $region3
  $region8: #{masked_basic_block.7} parent=0 // loop_exit
    _

// kernel: masked_basic_block.9
$region0: #{masked_basic_block.9}
  #allocation0 [shape = 'u32[]', space=smem, size = 0x4, offset = 0x4, fixed_abs, tag = 'smem constant byte address 0x4 - core index']
  #allocation1 [shape = 'u32[144,128]{1,0:T(1,128)}', space=vmem, size = 0x12000, scoped, tag = 'internal scratch']
  %s0 = inlined_call_operand.vmem [shape: f32[512,128], index: 0, kind: input, shape index: {}]
  %s1 = inlined_call_operand.vmem [shape: f32[1,128], index: 1, kind: input, shape index: {}]
  %s2 = inlined_call_operand.vmem [shape: f32[1,128], index: 2, kind: input, shape index: {}]
  %s3 = inlined_call_operand.vmem [shape: f32[512,128], index: 3, kind: input, shape index: {}]
  %s4 = inlined_call_operand.vmem [shape: f32[1,128], index: 4, kind: input, shape index: {}]
  %s5 = inlined_call_operand.vmem [shape: f32[1,128], index: 5, kind: input, shape index: {}]
  %s6 = inlined_call_operand.vmem [shape: f32[512,128], index: 6, kind: output, shape index: {}]
  %s7 = sld [smem:[#allocation0]]
  $region57: #{masked_basic_block.9} parent=0
    _
  %s9 = ssub.s32 1, %s7
  %s10 = scalar_select 0, %s9, %s7
  loop: start=0, step=1, limit=6
  $region2: #{masked_basic_block.9} parent=0 // loop_pre_header
    _
  $region3: #{masked_basic_block.9} parent=0 // loop_header
    %s12 = sphi 0, %s16
    %p13 = scmp.ge.s32.totalorder %s12, 6
    %s22 = sphi 0, %s24
    %s25 = sphi 0, %s22
    %s26 = sphi 0, %s25
    %s42 = sphi 0, %s26
    %s46 = sphi 0, %s46
    %s48 = sphi 0, %s46
    %s49 = sphi 0, %s48
    %s63 = sphi 0, %s49
    %s67 = sphi 0, %s67
    %s69 = sphi 0, %s67
    %s70 = sphi 0, %s69
    %s84 = sphi 0, %s70
    %s90 = sphi 0, %s92
    %s93 = sphi 0, %s90
    %s94 = sphi 0, %s93
    %s110 = sphi 0, %s94
    %s114 = sphi 0, %s114
    %s116 = sphi 0, %s114
    %s117 = sphi 0, %s116
    %s131 = sphi 0, %s117
    %s135 = sphi 0, %s135
    %s137 = sphi 0, %s135
    %s138 = sphi 0, %s137
    %s152 = sphi 0, %s138
    %s158 = sphi 0, %s160
    %s161 = sphi 0, %s158
    %s162 = sphi 0, %s161
    %s178 = sphi 0, %s162
  $region4: #{masked_basic_block.9} parent=0 // loop_header_branch
    %15 = sbr.rel (%p13) target = $region8
  $region5: #{masked_basic_block.9} parent=0 // loop_body
    %s17 = ssub.s32 %s12, 1
    %s18 = ssub.s32 %s12, 2
    %s19 = sadd.s32 %s12, 1
    %s20 = ssub.s32 %s12, %s19
    %p21 = scmp.eq.s32.totalorder %s20, 0
    %s23 = sadd.s32 %s22, 1
    %s24 = scalar_select %p21, %s22, %s23
    %p27 = pneg %p21
    %p28 = scmp.eq.s32.totalorder %s12, 3
    %p29 = por %p27, %p28
    %p30 = scmp.ne.s32.totalorder %s22, %s25
    %p31 = scmp.eq.s32.totalorder %s12, 0
    %p32 = por %p30, %p31
    %p33 = scmp.ne.s32.totalorder %s22, %s25
    %p34 = scmp.eq.s32.totalorder %s17, 3
    %p35 = por %p33, %p34
    %p36 = scmp.ne.s32.totalorder %s25, %s26
    %p37 = scmp.eq.s32.totalorder %s17, 0
    %p38 = por %p36, %p37
    %p39 = scmp.ne.s32.totalorder %s25, %s26
    %p40 = scmp.eq.s32.totalorder %s18, 3
    %p41 = por %p39, %p40
    %p43 = scmp.ne.s32.totalorder %s26, %s42
    %p44 = scmp.eq.s32.totalorder %s18, 0
    %p45 = por %p43, %p44
    %s47 = sadd.s32 %s46, 1
    %p50 = scmp.eq.s32.totalorder %s12, 3
    %p51 = scmp.ne.s32.totalorder %s46, %s48
    %p52 = scmp.eq.s32.totalorder %s12, 0
    %p53 = por %p51, %p52
    %p54 = scmp.ne.s32.totalorder %s46, %s48
    %p55 = scmp.eq.s32.totalorder %s17, 3
    %p56 = por %p54, %p55
    %p57 = scmp.ne.s32.totalorder %s48, %s49
    %p58 = scmp.eq.s32.totalorder %s17, 0
    %p59 = por %p57, %p58
    %p60 = scmp.ne.s32.totalorder %s48, %s49
    %p61 = scmp.eq.s32.totalorder %s18, 3
    %p62 = por %p60, %p61
    %p64 = scmp.ne.s32.totalorder %s49, %s63
    %p65 = scmp.eq.s32.totalorder %s18, 0
    %p66 = por %p64, %p65
    %s68 = sadd.s32 %s67, 1
    %p71 = scmp.eq.s32.totalorder %s12, 3
    %p72 = scmp.ne.s32.totalorder %s67, %s69
    %p73 = scmp.eq.s32.totalorder %s12, 0
    %p74 = por %p72, %p73
    %p75 = scmp.ne.s32.totalorder %s67, %s69
    %p76 = scmp.eq.s32.totalorder %s17, 3
    %p77 = por %p75, %p76
    %p78 = scmp.ne.s32.totalorder %s69, %s70
    %p79 = scmp.eq.s32.totalorder %s17, 0
    %p80 = por %p78, %p79
    %p81 = scmp.ne.s32.totalorder %s69, %s70
    %p82 = scmp.eq.s32.totalorder %s18, 3
    %p83 = por %p81, %p82
    %p85 = scmp.ne.s32.totalorder %s70, %s84
    %p86 = scmp.eq.s32.totalorder %s18, 0
    %p87 = por %p85, %p86
    %s88 = ssub.s32 %s12, %s19
    %p89 = scmp.eq.s32.totalorder %s88, 0
    %s91 = sadd.s32 %s90, 1
    %s92 = scalar_select %p89, %s90, %s91
    %p95 = pneg %p89
    %p96 = scmp.eq.s32.totalorder %s12, 3
    %p97 = por %p95, %p96
    %p98 = scmp.ne.s32.totalorder %s90, %s93
    %p99 = scmp.eq.s32.totalorder %s12, 0
    %p100 = por %p98, %p99
    %p101 = scmp.ne.s32.totalorder %s90, %s93
    %p102 = scmp.eq.s32.totalorder %s17, 3
    %p103 = por %p101, %p102
    %p104 = scmp.ne.s32.totalorder %s93, %s94
    %p105 = scmp.eq.s32.totalorder %s17, 0
    %p106 = por %p104, %p105
    %p107 = scmp.ne.s32.totalorder %s93, %s94
    %p108 = scmp.eq.s32.totalorder %s18, 3
    %p109 = por %p107, %p108
    %p111 = scmp.ne.s32.totalorder %s94, %s110
    %p112 = scmp.eq.s32.totalorder %s18, 0
    %p113 = por %p111, %p112
    %s115 = sadd.s32 %s114, 1
    %p118 = scmp.eq.s32.totalorder %s12, 3
    %p119 = scmp.ne.s32.totalorder %s114, %s116
    %p120 = scmp.eq.s32.totalorder %s12, 0
    %p121 = por %p119, %p120
    %p122 = scmp.ne.s32.totalorder %s114, %s116
    %p123 = scmp.eq.s32.totalorder %s17, 3
    %p124 = por %p122, %p123
    %p125 = scmp.ne.s32.totalorder %s116, %s117
    %p126 = scmp.eq.s32.totalorder %s17, 0
    %p127 = por %p125, %p126
    %p128 = scmp.ne.s32.totalorder %s116, %s117
    %p129 = scmp.eq.s32.totalorder %s18, 3
    %p130 = por %p128, %p129
    %p132 = scmp.ne.s32.totalorder %s117, %s131
    %p133 = scmp.eq.s32.totalorder %s18, 0
    %p134 = por %p132, %p133
    %s136 = sadd.s32 %s135, 1
    %p139 = scmp.eq.s32.totalorder %s12, 3
    %p140 = scmp.ne.s32.totalorder %s135, %s137
    %p141 = scmp.eq.s32.totalorder %s12, 0
    %p142 = por %p140, %p141
    %p143 = scmp.ne.s32.totalorder %s135, %s137
    %p144 = scmp.eq.s32.totalorder %s17, 3
    %p145 = por %p143, %p144
    %p146 = scmp.ne.s32.totalorder %s137, %s138
    %p147 = scmp.eq.s32.totalorder %s17, 0
    %p148 = por %p146, %p147
    %p149 = scmp.ne.s32.totalorder %s137, %s138
    %p150 = scmp.eq.s32.totalorder %s18, 3
    %p151 = por %p149, %p150
    %p153 = scmp.ne.s32.totalorder %s138, %s152
    %p154 = scmp.eq.s32.totalorder %s18, 0
    %p155 = por %p153, %p154
    %s156 = ssub.s32 %s12, %s19
    %p157 = scmp.eq.s32.totalorder %s156, 0
    %s159 = sadd.s32 %s158, 1
    %s160 = scalar_select %p157, %s158, %s159
    %p163 = pneg %p157
    %p164 = scmp.eq.s32.totalorder %s12, 3
    %p165 = por %p163, %p164
    %p166 = scmp.ne.s32.totalorder %s158, %s161
    %p167 = scmp.eq.s32.totalorder %s12, 0
    %p168 = por %p166, %p167
    %p169 = scmp.ne.s32.totalorder %s158, %s161
    %p170 = scmp.eq.s32.totalorder %s17, 3
    %p171 = por %p169, %p170
    %p172 = scmp.ne.s32.totalorder %s161, %s162
    %p173 = scmp.eq.s32.totalorder %s17, 0
    %p174 = por %p172, %p173
    %p175 = scmp.ne.s32.totalorder %s161, %s162
    %p176 = scmp.eq.s32.totalorder %s18, 3
    %p177 = por %p175, %p176
    %p179 = scmp.ne.s32.totalorder %s162, %s178
    %p180 = scmp.eq.s32.totalorder %s18, 0
    %p181 = por %p179, %p180
    %p182 = scmp.le.s32.totalorder 1, %s12
    %p183 = scmp.lt.s32.totalorder %s12, 5
    %p184 = pnand %p182, %p183
    %p185 = pneg %p184
    // Predicated region
    $region9: #{masked_basic_block.9} parent=5 // pred_check
      _
    $region10: #{masked_basic_block.9} parent=5 // pred_check_branch
      %187 = sbr.rel (%p184) target = $region12
    $region11: #{masked_basic_block.9} parent=5 // pred_region
      %s188 = ssub.s32 %s12, 1
      // Predicated region
      $region13: #{masked_basic_block.9} parent=11 // pred_check
        %p189 = pneg %p59
      $region14: #{masked_basic_block.9} parent=11 // pred_check_branch
        %191 = sbr.rel (%p189) target = $region16
      $region15: #{masked_basic_block.9} parent=11 // pred_region
        _
      $region16: #{masked_basic_block.9} parent=11 // pred_fallthru
        _
      // Predicated region
      $region17: #{masked_basic_block.9} parent=11 // pred_check
        %p192 = pneg %p80
      $region18: #{masked_basic_block.9} parent=11 // pred_check_branch
        %194 = sbr.rel (%p192) target = $region20
      $region19: #{masked_basic_block.9} parent=11 // pred_region
        _
      $region20: #{masked_basic_block.9} parent=11 // pred_fallthru
        _
      // Predicated region
      $region21: #{masked_basic_block.9} parent=11 // pred_check
        %p195 = pneg %p127
      $region22: #{masked_basic_block.9} parent=11 // pred_check_branch
        %197 = sbr.rel (%p195) target = $region24
      $region23: #{masked_basic_block.9} parent=11 // pred_region
        _
      $region24: #{masked_basic_block.9} parent=11 // pred_fallthru
        _
      // Predicated region
      $region25: #{masked_basic_block.9} parent=11 // pred_check
        %p198 = pneg %p148
      $region26: #{masked_basic_block.9} parent=11 // pred_check_branch
        %200 = sbr.rel (%p198) target = $region28
      $region27: #{masked_basic_block.9} parent=11 // pred_region
        _
      $region28: #{masked_basic_block.9} parent=11 // pred_fallthru
        _
    $region12: #{masked_basic_block.9} parent=5 // pred_fallthru
      _
    %p201 = scmp.lt.s32.totalorder %s12, 4
    // Predicated region
    $region29: #{masked_basic_block.9} parent=5 // pred_check
      %p202 = pneg %p201
    $region30: #{masked_basic_block.9} parent=5 // pred_check_branch
      %204 = sbr.rel (%p202) target = $region32
    $region31: #{masked_basic_block.9} parent=5 // pred_region
      // Predicated region
      $region33: #{masked_basic_block.9} parent=31 // pred_check
        %p205 = pneg %p32
      $region34: #{masked_basic_block.9} parent=31 // pred_check_branch
        %207 = sbr.rel (%p205) target = $region36
      $region35: #{masked_basic_block.9} parent=31 // pred_region
        %s208 = smul.u32 16, %s12
        %p209 = scmp.lt.s32.totalorder %s208, 63
        %s210 = scalar_select %p209, %s208, 63
        %s211 = smul.addr %s210, 8
        %s212 = scalar_lea.vmem %s0, %s211
        %s213 = smul.u32 16, %s12
      $region36: #{masked_basic_block.9} parent=31 // pred_fallthru
        _
      // Predicated region
      $region37: #{masked_basic_block.9} parent=31 // pred_check
        %p214 = pneg %p100
      $region38: #{masked_basic_block.9} parent=31 // pred_check_branch
        %216 = sbr.rel (%p214) target = $region40
      $region39: #{masked_basic_block.9} parent=31 // pred_region
        %s217 = smul.u32 16, %s12
        %p218 = scmp.lt.s32.totalorder %s217, 63
        %s219 = scalar_select %p218, %s217, 63
        %s220 = smul.addr %s219, 8
        %s221 = scalar_lea.vmem %s3, %s220
        %s222 = smul.u32 16, %s12
      $region40: #{masked_basic_block.9} parent=31 // pred_fallthru
        _
    $region32: #{masked_basic_block.9} parent=5 // pred_fallthru
      _
    %p223 = scmp.le.s32.totalorder 1, %s12
    %p224 = scmp.lt.s32.totalorder %s12, 5
    %p225 = pnand %p223, %p224
    %p226 = pneg %p225
    // Predicated region
    $region41: #{masked_basic_block.9} parent=5 // pred_check
      _
    $region42: #{masked_basic_block.9} parent=5 // pred_check_branch
      %228 = sbr.rel (%p225) target = $region44
    $region43: #{masked_basic_block.9} parent=5 // pred_region
      %s229 = ssub.s32 %s12, 1
      %s230 = smul.u32 16, %s17
      %p231 = scmp.lt.s32.totalorder %s230, 63
      %s232 = scalar_select %p231, %s230, 63
      %s233 = smul.addr %s232, 8
      %s234 = scalar_lea.vmem %s0, %s233
      %p235 = pneg %p38
      %p236 = pneg %p35
      %p237 = pneg %p59
      %p238 = pneg %p56
      %p239 = pneg %p80
      %p240 = pneg %p77
      %s241 = smul.u32 16, %s17
      %p242 = scmp.lt.s32.totalorder %s241, 63
      %s243 = scalar_select %p242, %s241, 63
      %s244 = smul.addr %s243, 8
      %s245 = scalar_lea.vmem %s3, %s244
      %p246 = pneg %p106
      %p247 = pneg %p103
      %p248 = pneg %p127
      %p249 = pneg %p124
      %p250 = pneg %p148
      %p251 = pneg %p145
      %p252 = pneg %p174
      %p253 = pneg %p171
      %s254 = smul.u32 16, %s17
      %p255 = scmp.lt.s32.totalorder %s254, 63
      %s256 = scalar_select %p255, %s254, 63
      %s257 = smul.addr %s256, 8
      %s258 = scalar_lea.vmem %s6, %s257
      %s259 = smul.u32 16, %s17
      %p260 = scmp.lt.s32.totalorder %s259, 63
      %s261 = scalar_select %p260, %s259, 63
      %s262 = smul.addr %s261, 8
      %s263 = scalar_lea.vmem %s0, %s262
      %s264 = smul.u32 16, %s17
      %s265 = smul.u32 16, %s17
      %p266 = scmp.lt.s32.totalorder %s265, 63
      %s267 = scalar_select %p266, %s265, 63
      %s268 = smul.addr %s267, 8
      %s269 = scalar_lea.vmem %s3, %s268
      %s270 = smul.u32 16, %s17
      %s271 = smul.u32 16, %s17
      %p272 = scmp.lt.s32.totalorder %s271, 63
      %s273 = scalar_select %p272, %s271, 63
      %s274 = smul.addr %s273, 8
      %s275 = scalar_lea.vmem %s6, %s274
      %s276 = smul.u32 16, %s17
      %v277 = vld [vmem:[%s263] sm:$0xff]
      %v278 = vld [vmem:[%s263 + $0x8] sm:$0xff]
      %v279 = vld [vmem:[%s263 + $0x10] sm:$0xff]
      %v280 = vld [vmem:[%s263 + $0x18] sm:$0xff]
      %v281 = vld [vmem:[%s263 + $0x20] sm:$0xff]
      %v282 = vld [vmem:[%s263 + $0x28] sm:$0xff]
      %v283 = vld [vmem:[%s263 + $0x30] sm:$0xff]
      %v284 = vld [vmem:[%s263 + $0x38] sm:$0xff]
      %v285 = vld [vmem:[%s263 + $0x40] sm:$0xff]
      %v286 = vld [vmem:[%s263 + $0x48] sm:$0xff]
      %v287 = vld [vmem:[%s263 + $0x50] sm:$0xff]
      %v288 = vld [vmem:[%s263 + $0x58] sm:$0xff]
      %v289 = vld [vmem:[%s263 + $0x60] sm:$0xff]
      %v290 = vld [vmem:[%s263 + $0x68] sm:$0xff]
      %v291 = vld [vmem:[%s263 + $0x70] sm:$0xff]
      %v292 = vld [vmem:[%s263 + $0x78] sm:$0xff]
      %v293 = vld [vmem:[%s1] sm:$0x1]
      %v295 = vlaneseq
      %v296 = vshrl.u32 %v295, 7
      %v297 = vsub.s32 0, %v296
      %v298 = vrot.slane %v293, %v297
      %v300 = vmul.f32 %v277, %v298
      %v301 = vmul.f32 %v278, %v298
      %v302 = vmul.f32 %v279, %v298
      %v303 = vmul.f32 %v280, %v298
      %v304 = vmul.f32 %v281, %v298
      %v305 = vmul.f32 %v282, %v298
      %v306 = vmul.f32 %v283, %v298
      %v307 = vmul.f32 %v284, %v298
      %v308 = vmul.f32 %v285, %v298
      %v309 = vmul.f32 %v286, %v298
      %v310 = vmul.f32 %v287, %v298
      %v311 = vmul.f32 %v288, %v298
      %v312 = vmul.f32 %v289, %v298
      %v313 = vmul.f32 %v290, %v298
      %v314 = vmul.f32 %v291, %v298
      %v315 = vmul.f32 %v292, %v298
      %v316 = vld [vmem:[%s2] sm:$0x1]
      %v318 = vlaneseq
      %v319 = vshrl.u32 %v318, 7
      %v320 = vsub.s32 0, %v319
      %v321 = vrot.slane %v316, %v320
      %v323 = vadd.f32 %v300, %v321
      %v324 = vadd.f32 %v301, %v321
      %v325 = vadd.f32 %v302, %v321
      %v326 = vadd.f32 %v303, %v321
      %v327 = vadd.f32 %v304, %v321
      %v328 = vadd.f32 %v305, %v321
      %v329 = vadd.f32 %v306, %v321
      %v330 = vadd.f32 %v307, %v321
      %v331 = vadd.f32 %v308, %v321
      %v332 = vadd.f32 %v309, %v321
      %v333 = vadd.f32 %v310, %v321
      %v334 = vadd.f32 %v311, %v321
      %v335 = vadd.f32 %v312, %v321
      %v336 = vadd.f32 %v313, %v321
      %v337 = vadd.f32 %v314, %v321
      %v338 = vadd.f32 %v315, %v321
      %v339 = vld [vmem:[%s269] sm:$0xff]
      %v340 = vld [vmem:[%s269 + $0x8] sm:$0xff]
      %v341 = vld [vmem:[%s269 + $0x10] sm:$0xff]
      %v342 = vld [vmem:[%s269 + $0x18] sm:$0xff]
      %v343 = vld [vmem:[%s269 + $0x20] sm:$0xff]
      %v344 = vld [vmem:[%s269 + $0x28] sm:$0xff]
      %v345 = vld [vmem:[%s269 + $0x30] sm:$0xff]
      %v346 = vld [vmem:[%s269 + $0x38] sm:$0xff]
      %v347 = vld [vmem:[%s269 + $0x40] sm:$0xff]
      %v348 = vld [vmem:[%s269 + $0x48] sm:$0xff]
      %v349 = vld [vmem:[%s269 + $0x50] sm:$0xff]
      %v350 = vld [vmem:[%s269 + $0x58] sm:$0xff]
      %v351 = vld [vmem:[%s269 + $0x60] sm:$0xff]
      %v352 = vld [vmem:[%s269 + $0x68] sm:$0xff]
      %v353 = vld [vmem:[%s269 + $0x70] sm:$0xff]
      %v354 = vld [vmem:[%s269 + $0x78] sm:$0xff]
      %v355 = vld [vmem:[%s4] sm:$0x1]
      %v357 = vlaneseq
      %v358 = vshrl.u32 %v357, 7
      %v359 = vsub.s32 0, %v358
      %v360 = vrot.slane %v355, %v359
      %v362 = vmul.f32 %v339, %v360
      %v363 = vmul.f32 %v340, %v360
      %v364 = vmul.f32 %v341, %v360
      %v365 = vmul.f32 %v342, %v360
      %v366 = vmul.f32 %v343, %v360
      %v367 = vmul.f32 %v344, %v360
      %v368 = vmul.f32 %v345, %v360
      %v369 = vmul.f32 %v346, %v360
      %v370 = vmul.f32 %v347, %v360
      %v371 = vmul.f32 %v348, %v360
      %v372 = vmul.f32 %v349, %v360
      %v373 = vmul.f32 %v350, %v360
      %v374 = vmul.f32 %v351, %v360
      %v375 = vmul.f32 %v352, %v360
      %v376 = vmul.f32 %v353, %v360
      %v377 = vmul.f32 %v354, %v360
      %v378 = vld [vmem:[%s5] sm:$0x1]
      %v380 = vlaneseq
      %v381 = vshrl.u32 %v380, 7
      %v382 = vsub.s32 0, %v381
      %v383 = vrot.slane %v378, %v382
      %v385 = vadd.f32 %v362, %v383
      %v386 = vadd.f32 %v363, %v383
      %v387 = vadd.f32 %v364, %v383
      %v388 = vadd.f32 %v365, %v383
      %v389 = vadd.f32 %v366, %v383
      %v390 = vadd.f32 %v367, %v383
      %v391 = vadd.f32 %v368, %v383
      %v392 = vadd.f32 %v369, %v383
      %v393 = vadd.f32 %v370, %v383
      %v394 = vadd.f32 %v371, %v383
      %v395 = vadd.f32 %v372, %v383
      %v396 = vadd.f32 %v373, %v383
      %v397 = vadd.f32 %v374, %v383
      %v398 = vadd.f32 %v375, %v383
      %v399 = vadd.f32 %v376, %v383
      %v400 = vadd.f32 %v377, %v383
      %v401 = vadd.f32 %v323, %v385
      %v402 = vadd.f32 %v324, %v386
      %v403 = vadd.f32 %v325, %v387
      %v404 = vadd.f32 %v326, %v388
      %v405 = vadd.f32 %v327, %v389
      %v406 = vadd.f32 %v328, %v390
      %v407 = vadd.f32 %v329, %v391
      %v408 = vadd.f32 %v330, %v392
      %v409 = vadd.f32 %v331, %v393
      %v410 = vadd.f32 %v332, %v394
      %v411 = vadd.f32 %v333, %v395
      %v412 = vadd.f32 %v334, %v396
      %v413 = vadd.f32 %v335, %v397
      %v414 = vadd.f32 %v336, %v398
      %v415 = vadd.f32 %v337, %v399
      %v416 = vadd.f32 %v338, %v400
      %v417 = vmax.f32 %v401, 0.0
      %v418 = vmax.f32 %v402, 0.0
      %v419 = vmax.f32 %v403, 0.0
      %v420 = vmax.f32 %v404, 0.0
      %v421 = vmax.f32 %v405, 0.0
      %v422 = vmax.f32 %v406, 0.0
      %v423 = vmax.f32 %v407, 0.0
      %v424 = vmax.f32 %v408, 0.0
      %v425 = vmax.f32 %v409, 0.0
      %v426 = vmax.f32 %v410, 0.0
      %v427 = vmax.f32 %v411, 0.0
      %v428 = vmax.f32 %v412, 0.0
      %v429 = vmax.f32 %v413, 0.0
      %v430 = vmax.f32 %v414, 0.0
      %v431 = vmax.f32 %v415, 0.0
      %v432 = vmax.f32 %v416, 0.0
      %433 = vst [vmem:[%s275] sm:$0xff] %v417
      %434 = vst [vmem:[%s275 + $0x8] sm:$0xff] %v418
      %435 = vst [vmem:[%s275 + $0x10] sm:$0xff] %v419
      %436 = vst [vmem:[%s275 + $0x18] sm:$0xff] %v420
      %437 = vst [vmem:[%s275 + $0x20] sm:$0xff] %v421
      %438 = vst [vmem:[%s275 + $0x28] sm:$0xff] %v422
      %439 = vst [vmem:[%s275 + $0x30] sm:$0xff] %v423
      %440 = vst [vmem:[%s275 + $0x38] sm:$0xff] %v424
      %441 = vst [vmem:[%s275 + $0x40] sm:$0xff] %v425
      %442 = vst [vmem:[%s275 + $0x48] sm:$0xff] %v426
      %443 = vst [vmem:[%s275 + $0x50] sm:$0xff] %v427
      %444 = vst [vmem:[%s275 + $0x58] sm:$0xff] %v428
      %445 = vst [vmem:[%s275 + $0x60] sm:$0xff] %v429
      %446 = vst [vmem:[%s275 + $0x68] sm:$0xff] %v430
      %447 = vst [vmem:[%s275 + $0x70] sm:$0xff] %v431
      %448 = vst [vmem:[%s275 + $0x78] sm:$0xff] %v432
      %s449 = smul.u32 16, %s17
      %p450 = scmp.lt.s32.totalorder %s449, 63
      %s451 = scalar_select %p450, %s449, 63
      %s452 = smul.addr %s451, 8
      %s453 = scalar_lea.vmem %s6, %s452
      // Predicated region
      $region45: #{masked_basic_block.9} parent=43 // pred_check
        %p454 = pneg %p171
      $region46: #{masked_basic_block.9} parent=43 // pred_check_branch
        %456 = sbr.rel (%p454) target = $region48
      $region47: #{masked_basic_block.9} parent=43 // pred_region
        %s457 = smul.u32 16, %s17
      $region48: #{masked_basic_block.9} parent=43 // pred_fallthru
        _
    $region44: #{masked_basic_block.9} parent=5 // pred_fallthru
      _
    %p458 = scmp.le.s32.totalorder 2, %s12
    // Predicated region
    $region49: #{masked_basic_block.9} parent=5 // pred_check
      %p459 = pneg %p458
    $region50: #{masked_basic_block.9} parent=5 // pred_check_branch
      %461 = sbr.rel (%p459) target = $region52
    $region51: #{masked_basic_block.9} parent=5 // pred_region
      %s462 = ssub.s32 %s12, 2
      // Predicated region
      $region53: #{masked_basic_block.9} parent=51 // pred_check
        %p463 = pneg %p177
      $region54: #{masked_basic_block.9} parent=51 // pred_check_branch
        %465 = sbr.rel (%p463) target = $region56
      $region55: #{masked_basic_block.9} parent=51 // pred_region
        %s466 = smul.u32 16, %s18
        %p467 = scmp.lt.s32.totalorder %s466, 63
        %s468 = scalar_select %p467, %s466, 63
        %s469 = smul.addr %s468, 8
        %s470 = scalar_lea.vmem %s6, %s469
      $region56: #{masked_basic_block.9} parent=51 // pred_fallthru
        _
    $region52: #{masked_basic_block.9} parent=5 // pred_fallthru
      _
  $region6: #{masked_basic_block.9} parent=0 // loop_footer
    %s16 = sadd.s32 1, %s12
  $region7: #{masked_basic_block.9} parent=0 // loop_footer_branch
    %11 = sbr.rel target = $region3
  $region8: #{masked_basic_block.9} parent=0 // loop_exit
    _

</llo_original>
